<compile_context>
chip_gen: v6e
topology: v6e:2x2x1
jax: 0.10.0
libtpu: 0.0.40
codegen_flags: <defaults>
</compile_context>

<pallas_src>
import functools

import jax
import jax.numpy as jnp
from jax.experimental import pallas as pl
from jax.experimental.pallas import tpu as pltpu


def _pool_head_kernel(x_ref, w_ref, bias_ref, out_ref, *, inv_hw):
    """One batch element: global average pool fused with Linear(C, 1)."""
    b = pl.program_id(0)

    x = x_ref[0].astype(jnp.float32)       # (C, HW)
    w = w_ref[...].astype(jnp.float32)     # (C, 1) -> lane-broadcast on the VPU

    # adaptive_avg_pool2d(x, 1) + Linear(C, 1), fused:
    #   logit = (1/HW) * sum_{c,hw} x[c,hw] * w[c] + bias
    # Elementwise multiply runs on the VPU; a single cross-lane/sublane reduce at the end.
    weighted = x * w                                              # (C, HW)
    logit = jnp.sum(weighted) * jnp.float32(inv_hw) + bias_ref[0, 0]

    # nn.Dropout(0.3) is the identity at inference time (model.eval()); nothing to do.
    out_ref[b, 0] = logit


def melanoma_head_forward(features, head_weight, head_bias):
    """MelanomaModel.forward given the EfficientNet-B1 feature map.

    features:    (B, C, H, W)  encoder output (C = 1280 for EfficientNet-B1)
    head_weight: (1, C)        nn.Linear(1280, 1).weight
    head_bias:   (1,)          nn.Linear(1280, 1).bias
    returns:     (B, 1) float32 logits
    """
    B, C, H, W = features.shape
    HW = H * W

    x = features.reshape(B, C, HW)                 # free reshape, no HBM copy
    w = head_weight.reshape(C, 1)                  # (C, 1) column for in-kernel broadcast
    bias = head_bias.reshape(1, 1).astype(jnp.float32)

    kernel = functools.partial(_pool_head_kernel, inv_hw=1.0 / HW)

    out = pl.pallas_call(
        kernel,
        out_shape=jax.ShapeDtypeStruct((B, 1), jnp.float32),
        grid=(B,),
        in_specs=[
            # One (C, HW) feature block per grid step -> double-buffered DMA pipeline.
            pl.BlockSpec((1, C, HW), lambda b: (b, 0, 0)),
            # Head weight: constant block index -> stays resident in VMEM.
            pl.BlockSpec((C, 1), lambda b: (0, 0)),
            # Bias: scalar, whole (1, 1) array in SMEM.
            pl.BlockSpec(memory_space=pltpu.SMEM),
        ],
        # (B, 1) output resident in SMEM across the grid; one element written per step.
        out_specs=pl.BlockSpec(memory_space=pltpu.SMEM),
        compiler_params=pltpu.CompilerParams(
            dimension_semantics=("arbitrary",),
        ),
    )(x, w, bias)

    return out


def _melanoma_head_ref(features, head_weight, head_bias):
    """Pure-JAX reference: adaptive_avg_pool2d(., 1) -> dropout(eval) -> Linear(C, 1)."""
    f = features.astype(jnp.float32)
    pooled = jnp.mean(f, axis=(2, 3))                                    # (B, C)
    logits = jnp.sum(pooled * head_weight.astype(jnp.float32), axis=-1,
                     keepdims=True)                                      # (B, 1)
    return logits + head_bias.astype(jnp.float32)


if __name__ == "__main__":
    key = jax.random.PRNGKey(0)
    k1, k2, k3 = jax.random.split(key, 3)

    # Small shapes consistent with the module: the head is Linear(1280, 1), so the
    # feature map has 1280 channels; 8x8 spatial is what a 256x256 image produces
    # from EfficientNet-B1. Batch = 2.
    B, C, H, W = 2, 1280, 8, 8
    features = jax.random.normal(k1, (B, C, H, W), dtype=jnp.float32)
    head_weight = 0.02 * jax.random.normal(k2, (1, C), dtype=jnp.float32)
    head_bias = 0.02 * jax.random.normal(k3, (1,), dtype=jnp.float32)

    logits = melanoma_head_forward(features, head_weight, head_bias)
    logits = jax.block_until_ready(logits)

    ref = _melanoma_head_ref(features, head_weight, head_bias)
    assert logits.shape == (B, 1), logits.shape
    assert jnp.allclose(logits, ref, rtol=1e-4, atol=1e-5), (logits, ref)

    print("KERNEL_OK")
</pallas_src>

<mosaic_0001>
module attributes {stable_mosaic.version = 11 : i64} {
  func.func @_pool_head_kernel(%arg0: i32, %arg1: memref<1x1280x64xf32, #tpu.memory_space<vmem>>, %arg2: memref<1280x1xf32, #tpu.memory_space<vmem>>, %arg3: memref<1x1xf32, #tpu.memory_space<smem>>, %arg4: memref<2x1xf32, #tpu.memory_space<smem>>) attributes {dimension_semantics = [#tpu.dimension_semantics<arbitrary>], iteration_bounds = array<i64: 2>, scalar_prefetch = 0 : i64, scratch_operands = 0 : i64, tpu.core_type = #tpu.core_type<tc>, window_params = [{transform_indices = @transform_0, window_bounds = array<i64: 1, 1280, 64>}, {pipeline_mode = #tpu.pipeline_mode<synchronous>, transform_indices = @transform_1, window_bounds = array<i64: 1280, 1>}, {transform_indices = @transform_2, window_bounds = array<i64: 1, 1>}, {transform_indices = @transform_3, window_bounds = array<i64: 2, 1>}]} {
    %c0 = arith.constant 0 : index
    %c0_0 = arith.constant 0 : index
    %c0_1 = arith.constant 0 : index
    %0 = vector.load %arg1[%c0, %c0_0, %c0_1] : memref<1x1280x64xf32, #tpu.memory_space<vmem>>, vector<1x1280x64xf32>
    %1 = vector.shape_cast %0 : vector<1x1280x64xf32> to vector<1280x64xf32>
    %c0_2 = arith.constant 0 : index
    %c0_3 = arith.constant 0 : index
    %2 = vector.load %arg2[%c0_2, %c0_3] : memref<1280x1xf32, #tpu.memory_space<vmem>>, vector<1280x1xf32>
    %3 = vector.broadcast %2 : vector<1280x1xf32> to vector<1280x64xf32>
    %4 = arith.mulf %1, %3 : vector<1280x64xf32>
    %5 = vector.shape_cast %4 : vector<1280x64xf32> to vector<1x1280x64xf32>
    %cst = arith.constant dense<0.000000e+00> : vector<1xf32>
    %6 = vector.multi_reduction <add>, %5, %cst [1, 2] : vector<1x1280x64xf32> to vector<1xf32>
    %7 = vector.shape_cast %6 : vector<1xf32> to vector<1x1x1xf32>
    %8 = vector.extract %7[0, 0, 0] : f32 from vector<1x1x1xf32>
    %cst_4 = arith.constant 1.562500e-02 : f32
    %9 = arith.mulf %8, %cst_4 : f32
    %c0_5 = arith.constant 0 : index
    %c0_6 = arith.constant 0 : index
    %10 = memref.load %arg3[%c0_5, %c0_6] : memref<1x1xf32, #tpu.memory_space<smem>>
    %11 = arith.addf %9, %10 : f32
    %12 = arith.index_cast %arg0 : i32 to index
    %c0_7 = arith.constant 0 : index
    %13 = memref.load %arg4[%12, %c0_7] : memref<2x1xf32, #tpu.memory_space<smem>>
    memref.store %11, %arg4[%12, %c0_7] : memref<2x1xf32, #tpu.memory_space<smem>>
    return
  }
  func.func @transform_0(%arg0: i32) -> (i32, i32, i32) {
    %c0_i32 = arith.constant 0 : i32
    %c0_i32_0 = arith.constant 0 : i32
    %c0_i32_1 = arith.constant 0 : i32
    return %arg0, %c0_i32, %c0_i32_0 : i32, i32, i32
  }
  func.func @transform_1(%arg0: i32) -> (i32, i32) {
    %c0_i32 = arith.constant 0 : i32
    %c0_i32_0 = arith.constant 0 : i32
    %c0_i32_1 = arith.constant 0 : i32
    return %c0_i32, %c0_i32_0 : i32, i32
  }
  func.func @transform_2(%arg0: i32) -> (i32, i32) {
    %c0_i32 = arith.constant 0 : i32
    %c0_i32_0 = arith.constant 0 : i32
    %c0_i32_1 = arith.constant 0 : i32
    return %c0_i32, %c0_i32_0 : i32, i32
  }
  func.func @transform_3(%arg0: i32) -> (i32, i32) {
    %c0_i32 = arith.constant 0 : i32
    %c0_i32_0 = arith.constant 0 : i32
    %c0_i32_1 = arith.constant 0 : i32
    return %c0_i32, %c0_i32_0 : i32, i32
  }
}

</mosaic_0001>

<llo_original>
// kernel: tpu_custom_call.1
$region0: #{tpu_custom_call.1}
  #allocation0 [shape = 'u32[]', space=smem, size = 0x4, offset = 0x4, fixed_abs, tag = 'smem constant byte address 0x4 - core index']
  #allocation1 [shape = 'u32[144,128]{1,0:T(1,128)}', space=vmem, size = 0x12000, scoped, tag = 'internal scratch']
  #allocation2 [shape = 'f32[1,1]{1,0:T(1,128)S(6)}', space=smem, size = 0x200, scoped, tag = 'scoped memory for tpu_custom_call.1']
  %s0 = inlined_call_operand.vmem [shape: f32[2,1280,64], index: 0, kind: input, shape index: {}]
  %s1 = inlined_call_operand.vmem [shape: f32[1280,1], index: 1, kind: input, shape index: {}]
  %s2 = inlined_call_operand.<no memory space> [shape: f32[1,1], index: 2, kind: input, shape index: {}]
  %s3 = inlined_call_operand.vmem [shape: f32[2,1], index: 3, kind: output, shape index: {}]
  %s4 = sld [smem:[#allocation0]]
  $region45: #{tpu_custom_call.1} parent=0
    _
  %s6 = ssub.s32 1, %s4
  %s7 = scalar_select 0, %s6, %s4
  %8 = sst [smem:[#allocation2]] %s2
  $region1: #{tpu_custom_call.1} parent=0
    #allocation3 [shape = 'u8[1024]{0}', space=smem, size = 0x400, scoped, tag = 'output window, operand 0, single buffered']
    #allocation4 [shape = 's32[2]{0}', space=sflag, size = 0x8, scoped, tag = 'scoped memory for tpu_custom_call.1']
    %9 = vsyncpa [#allocation4], 0
    loop: start=0, step=1, limit=4
    $region2: #{tpu_custom_call.1} parent=1 // loop_pre_header
      _
    $region3: #{tpu_custom_call.1} parent=1 // loop_header
      %s11 = sphi 0, %s15
      %p12 = scmp.ge.s32.totalorder %s11, 4
      %s21 = sphi 0, %s23
      %s24 = sphi 0, %s21
      %s25 = sphi 0, %s24
      %s41 = sphi 0, %s25
      %s45 = sphi 0, %s45
      %s47 = sphi 0, %s45
      %s48 = sphi 0, %s47
      %s62 = sphi 0, %s48
      %s66 = sphi 0, %s66
      %s68 = sphi 0, %s66
      %s69 = sphi 0, %s68
      %s83 = sphi 0, %s69
      %s87 = sphi 0, %s87
      %s89 = sphi 0, %s87
      %s90 = sphi 0, %s89
      %s104 = sphi 0, %s90
    $region4: #{tpu_custom_call.1} parent=1 // loop_header_branch
      %14 = sbr.rel (%p12) target = $region8
    $region5: #{tpu_custom_call.1} parent=1 // loop_body
      %s16 = ssub.s32 %s11, 1
      %s17 = ssub.s32 %s11, 2
      %s18 = sadd.s32 %s11, 1
      %s19 = ssub.s32 %s11, %s18
      %p20 = scmp.eq.s32.totalorder %s19, 0
      %s22 = sadd.s32 %s21, 1
      %s23 = scalar_select %p20, %s21, %s22
      %p26 = pneg %p20
      %p27 = scmp.eq.s32.totalorder %s11, 1
      %p28 = por %p26, %p27
      %p29 = scmp.ne.s32.totalorder %s21, %s24
      %p30 = scmp.eq.s32.totalorder %s11, 0
      %p31 = por %p29, %p30
      %p32 = scmp.ne.s32.totalorder %s21, %s24
      %p33 = scmp.eq.s32.totalorder %s16, 1
      %p34 = por %p32, %p33
      %p35 = scmp.ne.s32.totalorder %s24, %s25
      %p36 = scmp.eq.s32.totalorder %s16, 0
      %p37 = por %p35, %p36
      %p38 = scmp.ne.s32.totalorder %s24, %s25
      %p39 = scmp.eq.s32.totalorder %s17, 1
      %p40 = por %p38, %p39
      %p42 = scmp.ne.s32.totalorder %s25, %s41
      %p43 = scmp.eq.s32.totalorder %s17, 0
      %p44 = por %p42, %p43
      %s46 = sadd.s32 %s45, 1
      %p49 = scmp.eq.s32.totalorder %s11, 1
      %p50 = scmp.ne.s32.totalorder %s45, %s47
      %p51 = scmp.eq.s32.totalorder %s11, 0
      %p52 = por %p50, %p51
      %p53 = scmp.ne.s32.totalorder %s45, %s47
      %p54 = scmp.eq.s32.totalorder %s16, 1
      %p55 = por %p53, %p54
      %p56 = scmp.ne.s32.totalorder %s47, %s48
      %p57 = scmp.eq.s32.totalorder %s16, 0
      %p58 = por %p56, %p57
      %p59 = scmp.ne.s32.totalorder %s47, %s48
      %p60 = scmp.eq.s32.totalorder %s17, 1
      %p61 = por %p59, %p60
      %p63 = scmp.ne.s32.totalorder %s48, %s62
      %p64 = scmp.eq.s32.totalorder %s17, 0
      %p65 = por %p63, %p64
      %s67 = sadd.s32 %s66, 1
      %p70 = scmp.eq.s32.totalorder %s11, 1
      %p71 = scmp.ne.s32.totalorder %s66, %s68
      %p72 = scmp.eq.s32.totalorder %s11, 0
      %p73 = por %p71, %p72
      %p74 = scmp.ne.s32.totalorder %s66, %s68
      %p75 = scmp.eq.s32.totalorder %s16, 1
      %p76 = por %p74, %p75
      %p77 = scmp.ne.s32.totalorder %s68, %s69
      %p78 = scmp.eq.s32.totalorder %s16, 0
      %p79 = por %p77, %p78
      %p80 = scmp.ne.s32.totalorder %s68, %s69
      %p81 = scmp.eq.s32.totalorder %s17, 1
      %p82 = por %p80, %p81
      %p84 = scmp.ne.s32.totalorder %s69, %s83
      %p85 = scmp.eq.s32.totalorder %s17, 0
      %p86 = por %p84, %p85
      %s88 = sadd.s32 %s87, 1
      %p91 = scmp.eq.s32.totalorder %s11, 1
      %p92 = scmp.ne.s32.totalorder %s87, %s89
      %p93 = scmp.eq.s32.totalorder %s11, 0
      %p94 = por %p92, %p93
      %p95 = scmp.ne.s32.totalorder %s87, %s89
      %p96 = scmp.eq.s32.totalorder %s16, 1
      %p97 = por %p95, %p96
      %p98 = scmp.ne.s32.totalorder %s89, %s90
      %p99 = scmp.eq.s32.totalorder %s16, 0
      %p100 = por %p98, %p99
      %p101 = scmp.ne.s32.totalorder %s89, %s90
      %p102 = scmp.eq.s32.totalorder %s17, 1
      %p103 = por %p101, %p102
      %p105 = scmp.ne.s32.totalorder %s90, %s104
      %p106 = scmp.eq.s32.totalorder %s17, 0
      %p107 = por %p105, %p106
      %p108 = scmp.le.s32.totalorder 1, %s11
      %p109 = scmp.lt.s32.totalorder %s11, 3
      %p110 = pnand %p108, %p109
      %p111 = pneg %p110
      // Predicated region
      $region9: #{tpu_custom_call.1} parent=5 // pred_check
        _
      $region10: #{tpu_custom_call.1} parent=5 // pred_check_branch
        %113 = sbr.rel (%p110) target = $region12
      $region11: #{tpu_custom_call.1} parent=5 // pred_region
        %s114 = ssub.s32 %s11, 1
        // Predicated region
        $region13: #{tpu_custom_call.1} parent=11 // pred_check
          %p115 = pneg %p58
        $region14: #{tpu_custom_call.1} parent=11 // pred_check_branch
          %117 = sbr.rel (%p115) target = $region16
        $region15: #{tpu_custom_call.1} parent=11 // pred_region
          _
        $region16: #{tpu_custom_call.1} parent=11 // pred_fallthru
          _
        // Predicated region
        $region17: #{tpu_custom_call.1} parent=11 // pred_check
          %p118 = pneg %p79
        $region18: #{tpu_custom_call.1} parent=11 // pred_check_branch
          %120 = sbr.rel (%p118) target = $region20
        $region19: #{tpu_custom_call.1} parent=11 // pred_region
          _
        $region20: #{tpu_custom_call.1} parent=11 // pred_fallthru
          _
      $region12: #{tpu_custom_call.1} parent=5 // pred_fallthru
        _
      %p121 = scmp.lt.s32.totalorder %s11, 2
      // Predicated region
      $region21: #{tpu_custom_call.1} parent=5 // pred_check
        %p122 = pneg %p121
      $region22: #{tpu_custom_call.1} parent=5 // pred_check_branch
        %124 = sbr.rel (%p122) target = $region24
      $region23: #{tpu_custom_call.1} parent=5 // pred_region
        // Predicated region
        $region25: #{tpu_custom_call.1} parent=23 // pred_check
          %p125 = pneg %p31
        $region26: #{tpu_custom_call.1} parent=23 // pred_check_branch
          %127 = sbr.rel (%p125) target = $region28
        $region27: #{tpu_custom_call.1} parent=23 // pred_region
          %p128 = scmp.lt.s32.totalorder %s11, 1
          %s129 = scalar_select %p128, %s11, 1
          %s130 = smul.addr %s129, 160
          %s131 = smul.addr %s130, 8
          %s132 = scalar_lea.vmem %s0, %s131
        $region28: #{tpu_custom_call.1} parent=23 // pred_fallthru
          _
      $region24: #{tpu_custom_call.1} parent=5 // pred_fallthru
        _
      %p133 = scmp.le.s32.totalorder 1, %s11
      %p134 = scmp.lt.s32.totalorder %s11, 3
      %p135 = pnand %p133, %p134
      %p136 = pneg %p135
      // Predicated region
      $region29: #{tpu_custom_call.1} parent=5 // pred_check
        _
      $region30: #{tpu_custom_call.1} parent=5 // pred_check_branch
        %138 = sbr.rel (%p135) target = $region32
      $region31: #{tpu_custom_call.1} parent=5 // pred_region
        %s139 = ssub.s32 %s11, 1
        %p140 = scmp.lt.s32.totalorder %s16, 1
        %s141 = scalar_select %p140, %s16, 1
        %s142 = smul.addr %s141, 160
        %s143 = smul.addr %s142, 8
        %s144 = scalar_lea.vmem %s0, %s143
        %p145 = pneg %p37
        %p146 = pneg %p34
        %p147 = pneg %p58
        %p148 = pneg %p55
        %p149 = pneg %p79
        %p150 = pneg %p76
        %p151 = pneg %p100
        %p152 = pneg %p97
        %p153 = scmp.lt.s32.totalorder %s16, 1
        %s154 = scalar_select %p153, %s16, 1
        %s155 = smul.addr %s154, 160
        %s156 = smul.addr %s155, 8
        %s157 = scalar_lea.vmem %s0, %s156
        %v158 = vld [vmem:[%s157] sm:$0xff]
        %v159 = vld [vmem:[%s157 + $0x8] sm:$0xff]
        %v160 = vld [vmem:[%s157 + $0x10] sm:$0xff]
        %v161 = vld [vmem:[%s157 + $0x18] sm:$0xff]
        %v162 = vld [vmem:[%s157 + $0x20] sm:$0xff]
        %v163 = vld [vmem:[%s157 + $0x28] sm:$0xff]
        %v164 = vld [vmem:[%s157 + $0x30] sm:$0xff]
        %v165 = vld [vmem:[%s157 + $0x38] sm:$0xff]
        %v166 = vld [vmem:[%s157 + $0x40] sm:$0xff]
        %v167 = vld [vmem:[%s157 + $0x48] sm:$0xff]
        %v168 = vld [vmem:[%s157 + $0x50] sm:$0xff]
        %v169 = vld [vmem:[%s157 + $0x58] sm:$0xff]
        %v170 = vld [vmem:[%s157 + $0x60] sm:$0xff]
        %v171 = vld [vmem:[%s157 + $0x68] sm:$0xff]
        %v172 = vld [vmem:[%s157 + $0x70] sm:$0xff]
        %v173 = vld [vmem:[%s157 + $0x78] sm:$0xff]
        %v174 = vld [vmem:[%s157 + $0x80] sm:$0xff]
        %v175 = vld [vmem:[%s157 + $0x88] sm:$0xff]
        %v176 = vld [vmem:[%s157 + $0x90] sm:$0xff]
        %v177 = vld [vmem:[%s157 + $0x98] sm:$0xff]
        %v178 = vld [vmem:[%s157 + $0xa0] sm:$0xff]
        %v179 = vld [vmem:[%s157 + $0xa8] sm:$0xff]
        %v180 = vld [vmem:[%s157 + $0xb0] sm:$0xff]
        %v181 = vld [vmem:[%s157 + $0xb8] sm:$0xff]
        %v182 = vld [vmem:[%s157 + $0xc0] sm:$0xff]
        %v183 = vld [vmem:[%s157 + $0xc8] sm:$0xff]
        %v184 = vld [vmem:[%s157 + $0xd0] sm:$0xff]
        %v185 = vld [vmem:[%s157 + $0xd8] sm:$0xff]
        %v186 = vld [vmem:[%s157 + $0xe0] sm:$0xff]
        %v187 = vld [vmem:[%s157 + $0xe8] sm:$0xff]
        %v188 = vld [vmem:[%s157 + $0xf0] sm:$0xff]
        %v189 = vld [vmem:[%s157 + $0xf8] sm:$0xff]
        %v190 = vld [vmem:[%s157 + $0x100] sm:$0xff]
        %v191 = vld [vmem:[%s157 + $0x108] sm:$0xff]
        %v192 = vld [vmem:[%s157 + $0x110] sm:$0xff]
        %v193 = vld [vmem:[%s157 + $0x118] sm:$0xff]
        %v194 = vld [vmem:[%s157 + $0x120] sm:$0xff]
        %v195 = vld [vmem:[%s157 + $0x128] sm:$0xff]
        %v196 = vld [vmem:[%s157 + $0x130] sm:$0xff]
        %v197 = vld [vmem:[%s157 + $0x138] sm:$0xff]
        %v198 = vld [vmem:[%s157 + $0x140] sm:$0xff]
        %v199 = vld [vmem:[%s157 + $0x148] sm:$0xff]
        %v200 = vld [vmem:[%s157 + $0x150] sm:$0xff]
        %v201 = vld [vmem:[%s157 + $0x158] sm:$0xff]
        %v202 = vld [vmem:[%s157 + $0x160] sm:$0xff]
        %v203 = vld [vmem:[%s157 + $0x168] sm:$0xff]
        %v204 = vld [vmem:[%s157 + $0x170] sm:$0xff]
        %v205 = vld [vmem:[%s157 + $0x178] sm:$0xff]
        %v206 = vld [vmem:[%s157 + $0x180] sm:$0xff]
        %v207 = vld [vmem:[%s157 + $0x188] sm:$0xff]
        %v208 = vld [vmem:[%s157 + $0x190] sm:$0xff]
        %v209 = vld [vmem:[%s157 + $0x198] sm:$0xff]
        %v210 = vld [vmem:[%s157 + $0x1a0] sm:$0xff]
        %v211 = vld [vmem:[%s157 + $0x1a8] sm:$0xff]
        %v212 = vld [vmem:[%s157 + $0x1b0] sm:$0xff]
        %v213 = vld [vmem:[%s157 + $0x1b8] sm:$0xff]
        %v214 = vld [vmem:[%s157 + $0x1c0] sm:$0xff]
        %v215 = vld [vmem:[%s157 + $0x1c8] sm:$0xff]
        %v216 = vld [vmem:[%s157 + $0x1d0] sm:$0xff]
        %v217 = vld [vmem:[%s157 + $0x1d8] sm:$0xff]
        %v218 = vld [vmem:[%s157 + $0x1e0] sm:$0xff]
        %v219 = vld [vmem:[%s157 + $0x1e8] sm:$0xff]
        %v220 = vld [vmem:[%s157 + $0x1f0] sm:$0xff]
        %v221 = vld [vmem:[%s157 + $0x1f8] sm:$0xff]
        %v222 = vld [vmem:[%s157 + $0x200] sm:$0xff]
        %v223 = vld [vmem:[%s157 + $0x208] sm:$0xff]
        %v224 = vld [vmem:[%s157 + $0x210] sm:$0xff]
        %v225 = vld [vmem:[%s157 + $0x218] sm:$0xff]
        %v226 = vld [vmem:[%s157 + $0x220] sm:$0xff]
        %v227 = vld [vmem:[%s157 + $0x228] sm:$0xff]
        %v228 = vld [vmem:[%s157 + $0x230] sm:$0xff]
        %v229 = vld [vmem:[%s157 + $0x238] sm:$0xff]
        %v230 = vld [vmem:[%s157 + $0x240] sm:$0xff]
        %v231 = vld [vmem:[%s157 + $0x248] sm:$0xff]
        %v232 = vld [vmem:[%s157 + $0x250] sm:$0xff]
        %v233 = vld [vmem:[%s157 + $0x258] sm:$0xff]
        %v234 = vld [vmem:[%s157 + $0x260] sm:$0xff]
        %v235 = vld [vmem:[%s157 + $0x268] sm:$0xff]
        %v236 = vld [vmem:[%s157 + $0x270] sm:$0xff]
        %v237 = vld [vmem:[%s157 + $0x278] sm:$0xff]
        %v238 = vld [vmem:[%s157 + $0x280] sm:$0xff]
        %v239 = vld [vmem:[%s157 + $0x288] sm:$0xff]
        %v240 = vld [vmem:[%s157 + $0x290] sm:$0xff]
        %v241 = vld [vmem:[%s157 + $0x298] sm:$0xff]
        %v242 = vld [vmem:[%s157 + $0x2a0] sm:$0xff]
        %v243 = vld [vmem:[%s157 + $0x2a8] sm:$0xff]
        %v244 = vld [vmem:[%s157 + $0x2b0] sm:$0xff]
        %v245 = vld [vmem:[%s157 + $0x2b8] sm:$0xff]
        %v246 = vld [vmem:[%s157 + $0x2c0] sm:$0xff]
        %v247 = vld [vmem:[%s157 + $0x2c8] sm:$0xff]
        %v248 = vld [vmem:[%s157 + $0x2d0] sm:$0xff]
        %v249 = vld [vmem:[%s157 + $0x2d8] sm:$0xff]
        %v250 = vld [vmem:[%s157 + $0x2e0] sm:$0xff]
        %v251 = vld [vmem:[%s157 + $0x2e8] sm:$0xff]
        %v252 = vld [vmem:[%s157 + $0x2f0] sm:$0xff]
        %v253 = vld [vmem:[%s157 + $0x2f8] sm:$0xff]
        %v254 = vld [vmem:[%s157 + $0x300] sm:$0xff]
        %v255 = vld [vmem:[%s157 + $0x308] sm:$0xff]
        %v256 = vld [vmem:[%s157 + $0x310] sm:$0xff]
        %v257 = vld [vmem:[%s157 + $0x318] sm:$0xff]
        %v258 = vld [vmem:[%s157 + $0x320] sm:$0xff]
        %v259 = vld [vmem:[%s157 + $0x328] sm:$0xff]
        %v260 = vld [vmem:[%s157 + $0x330] sm:$0xff]
        %v261 = vld [vmem:[%s157 + $0x338] sm:$0xff]
        %v262 = vld [vmem:[%s157 + $0x340] sm:$0xff]
        %v263 = vld [vmem:[%s157 + $0x348] sm:$0xff]
        %v264 = vld [vmem:[%s157 + $0x350] sm:$0xff]
        %v265 = vld [vmem:[%s157 + $0x358] sm:$0xff]
        %v266 = vld [vmem:[%s157 + $0x360] sm:$0xff]
        %v267 = vld [vmem:[%s157 + $0x368] sm:$0xff]
        %v268 = vld [vmem:[%s157 + $0x370] sm:$0xff]
        %v269 = vld [vmem:[%s157 + $0x378] sm:$0xff]
        %v270 = vld [vmem:[%s157 + $0x380] sm:$0xff]
        %v271 = vld [vmem:[%s157 + $0x388] sm:$0xff]
        %v272 = vld [vmem:[%s157 + $0x390] sm:$0xff]
        %v273 = vld [vmem:[%s157 + $0x398] sm:$0xff]
        %v274 = vld [vmem:[%s157 + $0x3a0] sm:$0xff]
        %v275 = vld [vmem:[%s157 + $0x3a8] sm:$0xff]
        %v276 = vld [vmem:[%s157 + $0x3b0] sm:$0xff]
        %v277 = vld [vmem:[%s157 + $0x3b8] sm:$0xff]
        %v278 = vld [vmem:[%s157 + $0x3c0] sm:$0xff]
        %v279 = vld [vmem:[%s157 + $0x3c8] sm:$0xff]
        %v280 = vld [vmem:[%s157 + $0x3d0] sm:$0xff]
        %v281 = vld [vmem:[%s157 + $0x3d8] sm:$0xff]
        %v282 = vld [vmem:[%s157 + $0x3e0] sm:$0xff]
        %v283 = vld [vmem:[%s157 + $0x3e8] sm:$0xff]
        %v284 = vld [vmem:[%s157 + $0x3f0] sm:$0xff]
        %v285 = vld [vmem:[%s157 + $0x3f8] sm:$0xff]
        %v286 = vld [vmem:[%s157 + $0x400] sm:$0xff]
        %v287 = vld [vmem:[%s157 + $0x408] sm:$0xff]
        %v288 = vld [vmem:[%s157 + $0x410] sm:$0xff]
        %v289 = vld [vmem:[%s157 + $0x418] sm:$0xff]
        %v290 = vld [vmem:[%s157 + $0x420] sm:$0xff]
        %v291 = vld [vmem:[%s157 + $0x428] sm:$0xff]
        %v292 = vld [vmem:[%s157 + $0x430] sm:$0xff]
        %v293 = vld [vmem:[%s157 + $0x438] sm:$0xff]
        %v294 = vld [vmem:[%s157 + $0x440] sm:$0xff]
        %v295 = vld [vmem:[%s157 + $0x448] sm:$0xff]
        %v296 = vld [vmem:[%s157 + $0x450] sm:$0xff]
        %v297 = vld [vmem:[%s157 + $0x458] sm:$0xff]
        %v298 = vld [vmem:[%s157 + $0x460] sm:$0xff]
        %v299 = vld [vmem:[%s157 + $0x468] sm:$0xff]
        %v300 = vld [vmem:[%s157 + $0x470] sm:$0xff]
        %v301 = vld [vmem:[%s157 + $0x478] sm:$0xff]
        %v302 = vld [vmem:[%s157 + $0x480] sm:$0xff]
        %v303 = vld [vmem:[%s157 + $0x488] sm:$0xff]
        %v304 = vld [vmem:[%s157 + $0x490] sm:$0xff]
        %v305 = vld [vmem:[%s157 + $0x498] sm:$0xff]
        %v306 = vld [vmem:[%s157 + $0x4a0] sm:$0xff]
        %v307 = vld [vmem:[%s157 + $0x4a8] sm:$0xff]
        %v308 = vld [vmem:[%s157 + $0x4b0] sm:$0xff]
        %v309 = vld [vmem:[%s157 + $0x4b8] sm:$0xff]
        %v310 = vld [vmem:[%s157 + $0x4c0] sm:$0xff]
        %v311 = vld [vmem:[%s157 + $0x4c8] sm:$0xff]
        %v312 = vld [vmem:[%s157 + $0x4d0] sm:$0xff]
        %v313 = vld [vmem:[%s157 + $0x4d8] sm:$0xff]
        %v314 = vld [vmem:[%s157 + $0x4e0] sm:$0xff]
        %v315 = vld [vmem:[%s157 + $0x4e8] sm:$0xff]
        %v316 = vld [vmem:[%s157 + $0x4f0] sm:$0xff]
        %v317 = vld [vmem:[%s157 + $0x4f8] sm:$0xff]
        %v318 = vld [vmem:[%s1] sm:$0xff]
        %v319 = vld [vmem:[%s1 + $0x8] sm:$0xff]
        %v320 = vld [vmem:[%s1 + $0x10] sm:$0xff]
        %v321 = vld [vmem:[%s1 + $0x18] sm:$0xff]
        %v322 = vld [vmem:[%s1 + $0x20] sm:$0xff]
        %v323 = vld [vmem:[%s1 + $0x28] sm:$0xff]
        %v324 = vld [vmem:[%s1 + $0x30] sm:$0xff]
        %v325 = vld [vmem:[%s1 + $0x38] sm:$0xff]
        %v326 = vld [vmem:[%s1 + $0x40] sm:$0xff]
        %v327 = vld [vmem:[%s1 + $0x48] sm:$0xff]
        %v328 = vld [vmem:[%s1 + $0x50] sm:$0xff]
        %v329 = vld [vmem:[%s1 + $0x58] sm:$0xff]
        %v330 = vld [vmem:[%s1 + $0x60] sm:$0xff]
        %v331 = vld [vmem:[%s1 + $0x68] sm:$0xff]
        %v332 = vld [vmem:[%s1 + $0x70] sm:$0xff]
        %v333 = vld [vmem:[%s1 + $0x78] sm:$0xff]
        %v334 = vld [vmem:[%s1 + $0x80] sm:$0xff]
        %v335 = vld [vmem:[%s1 + $0x88] sm:$0xff]
        %v336 = vld [vmem:[%s1 + $0x90] sm:$0xff]
        %v337 = vld [vmem:[%s1 + $0x98] sm:$0xff]
        %v338 = vld [vmem:[%s1 + $0xa0] sm:$0xff]
        %v339 = vld [vmem:[%s1 + $0xa8] sm:$0xff]
        %v340 = vld [vmem:[%s1 + $0xb0] sm:$0xff]
        %v341 = vld [vmem:[%s1 + $0xb8] sm:$0xff]
        %v342 = vld [vmem:[%s1 + $0xc0] sm:$0xff]
        %v343 = vld [vmem:[%s1 + $0xc8] sm:$0xff]
        %v344 = vld [vmem:[%s1 + $0xd0] sm:$0xff]
        %v345 = vld [vmem:[%s1 + $0xd8] sm:$0xff]
        %v346 = vld [vmem:[%s1 + $0xe0] sm:$0xff]
        %v347 = vld [vmem:[%s1 + $0xe8] sm:$0xff]
        %v348 = vld [vmem:[%s1 + $0xf0] sm:$0xff]
        %v349 = vld [vmem:[%s1 + $0xf8] sm:$0xff]
        %v350 = vld [vmem:[%s1 + $0x100] sm:$0xff]
        %v351 = vld [vmem:[%s1 + $0x108] sm:$0xff]
        %v352 = vld [vmem:[%s1 + $0x110] sm:$0xff]
        %v353 = vld [vmem:[%s1 + $0x118] sm:$0xff]
        %v354 = vld [vmem:[%s1 + $0x120] sm:$0xff]
        %v355 = vld [vmem:[%s1 + $0x128] sm:$0xff]
        %v356 = vld [vmem:[%s1 + $0x130] sm:$0xff]
        %v357 = vld [vmem:[%s1 + $0x138] sm:$0xff]
        %v358 = vld [vmem:[%s1 + $0x140] sm:$0xff]
        %v359 = vld [vmem:[%s1 + $0x148] sm:$0xff]
        %v360 = vld [vmem:[%s1 + $0x150] sm:$0xff]
        %v361 = vld [vmem:[%s1 + $0x158] sm:$0xff]
        %v362 = vld [vmem:[%s1 + $0x160] sm:$0xff]
        %v363 = vld [vmem:[%s1 + $0x168] sm:$0xff]
        %v364 = vld [vmem:[%s1 + $0x170] sm:$0xff]
        %v365 = vld [vmem:[%s1 + $0x178] sm:$0xff]
        %v366 = vld [vmem:[%s1 + $0x180] sm:$0xff]
        %v367 = vld [vmem:[%s1 + $0x188] sm:$0xff]
        %v368 = vld [vmem:[%s1 + $0x190] sm:$0xff]
        %v369 = vld [vmem:[%s1 + $0x198] sm:$0xff]
        %v370 = vld [vmem:[%s1 + $0x1a0] sm:$0xff]
        %v371 = vld [vmem:[%s1 + $0x1a8] sm:$0xff]
        %v372 = vld [vmem:[%s1 + $0x1b0] sm:$0xff]
        %v373 = vld [vmem:[%s1 + $0x1b8] sm:$0xff]
        %v374 = vld [vmem:[%s1 + $0x1c0] sm:$0xff]
        %v375 = vld [vmem:[%s1 + $0x1c8] sm:$0xff]
        %v376 = vld [vmem:[%s1 + $0x1d0] sm:$0xff]
        %v377 = vld [vmem:[%s1 + $0x1d8] sm:$0xff]
        %v378 = vld [vmem:[%s1 + $0x1e0] sm:$0xff]
        %v379 = vld [vmem:[%s1 + $0x1e8] sm:$0xff]
        %v380 = vld [vmem:[%s1 + $0x1f0] sm:$0xff]
        %v381 = vld [vmem:[%s1 + $0x1f8] sm:$0xff]
        %v382 = vld [vmem:[%s1 + $0x200] sm:$0xff]
        %v383 = vld [vmem:[%s1 + $0x208] sm:$0xff]
        %v384 = vld [vmem:[%s1 + $0x210] sm:$0xff]
        %v385 = vld [vmem:[%s1 + $0x218] sm:$0xff]
        %v386 = vld [vmem:[%s1 + $0x220] sm:$0xff]
        %v387 = vld [vmem:[%s1 + $0x228] sm:$0xff]
        %v388 = vld [vmem:[%s1 + $0x230] sm:$0xff]
        %v389 = vld [vmem:[%s1 + $0x238] sm:$0xff]
        %v390 = vld [vmem:[%s1 + $0x240] sm:$0xff]
        %v391 = vld [vmem:[%s1 + $0x248] sm:$0xff]
        %v392 = vld [vmem:[%s1 + $0x250] sm:$0xff]
        %v393 = vld [vmem:[%s1 + $0x258] sm:$0xff]
        %v394 = vld [vmem:[%s1 + $0x260] sm:$0xff]
        %v395 = vld [vmem:[%s1 + $0x268] sm:$0xff]
        %v396 = vld [vmem:[%s1 + $0x270] sm:$0xff]
        %v397 = vld [vmem:[%s1 + $0x278] sm:$0xff]
        %v398 = vld [vmem:[%s1 + $0x280] sm:$0xff]
        %v399 = vld [vmem:[%s1 + $0x288] sm:$0xff]
        %v400 = vld [vmem:[%s1 + $0x290] sm:$0xff]
        %v401 = vld [vmem:[%s1 + $0x298] sm:$0xff]
        %v402 = vld [vmem:[%s1 + $0x2a0] sm:$0xff]
        %v403 = vld [vmem:[%s1 + $0x2a8] sm:$0xff]
        %v404 = vld [vmem:[%s1 + $0x2b0] sm:$0xff]
        %v405 = vld [vmem:[%s1 + $0x2b8] sm:$0xff]
        %v406 = vld [vmem:[%s1 + $0x2c0] sm:$0xff]
        %v407 = vld [vmem:[%s1 + $0x2c8] sm:$0xff]
        %v408 = vld [vmem:[%s1 + $0x2d0] sm:$0xff]
        %v409 = vld [vmem:[%s1 + $0x2d8] sm:$0xff]
        %v410 = vld [vmem:[%s1 + $0x2e0] sm:$0xff]
        %v411 = vld [vmem:[%s1 + $0x2e8] sm:$0xff]
        %v412 = vld [vmem:[%s1 + $0x2f0] sm:$0xff]
        %v413 = vld [vmem:[%s1 + $0x2f8] sm:$0xff]
        %v414 = vld [vmem:[%s1 + $0x300] sm:$0xff]
        %v415 = vld [vmem:[%s1 + $0x308] sm:$0xff]
        %v416 = vld [vmem:[%s1 + $0x310] sm:$0xff]
        %v417 = vld [vmem:[%s1 + $0x318] sm:$0xff]
        %v418 = vld [vmem:[%s1 + $0x320] sm:$0xff]
        %v419 = vld [vmem:[%s1 + $0x328] sm:$0xff]
        %v420 = vld [vmem:[%s1 + $0x330] sm:$0xff]
        %v421 = vld [vmem:[%s1 + $0x338] sm:$0xff]
        %v422 = vld [vmem:[%s1 + $0x340] sm:$0xff]
        %v423 = vld [vmem:[%s1 + $0x348] sm:$0xff]
        %v424 = vld [vmem:[%s1 + $0x350] sm:$0xff]
        %v425 = vld [vmem:[%s1 + $0x358] sm:$0xff]
        %v426 = vld [vmem:[%s1 + $0x360] sm:$0xff]
        %v427 = vld [vmem:[%s1 + $0x368] sm:$0xff]
        %v428 = vld [vmem:[%s1 + $0x370] sm:$0xff]
        %v429 = vld [vmem:[%s1 + $0x378] sm:$0xff]
        %v430 = vld [vmem:[%s1 + $0x380] sm:$0xff]
        %v431 = vld [vmem:[%s1 + $0x388] sm:$0xff]
        %v432 = vld [vmem:[%s1 + $0x390] sm:$0xff]
        %v433 = vld [vmem:[%s1 + $0x398] sm:$0xff]
        %v434 = vld [vmem:[%s1 + $0x3a0] sm:$0xff]
        %v435 = vld [vmem:[%s1 + $0x3a8] sm:$0xff]
        %v436 = vld [vmem:[%s1 + $0x3b0] sm:$0xff]
        %v437 = vld [vmem:[%s1 + $0x3b8] sm:$0xff]
        %v438 = vld [vmem:[%s1 + $0x3c0] sm:$0xff]
        %v439 = vld [vmem:[%s1 + $0x3c8] sm:$0xff]
        %v440 = vld [vmem:[%s1 + $0x3d0] sm:$0xff]
        %v441 = vld [vmem:[%s1 + $0x3d8] sm:$0xff]
        %v442 = vld [vmem:[%s1 + $0x3e0] sm:$0xff]
        %v443 = vld [vmem:[%s1 + $0x3e8] sm:$0xff]
        %v444 = vld [vmem:[%s1 + $0x3f0] sm:$0xff]
        %v445 = vld [vmem:[%s1 + $0x3f8] sm:$0xff]
        %v446 = vld [vmem:[%s1 + $0x400] sm:$0xff]
        %v447 = vld [vmem:[%s1 + $0x408] sm:$0xff]
        %v448 = vld [vmem:[%s1 + $0x410] sm:$0xff]
        %v449 = vld [vmem:[%s1 + $0x418] sm:$0xff]
        %v450 = vld [vmem:[%s1 + $0x420] sm:$0xff]
        %v451 = vld [vmem:[%s1 + $0x428] sm:$0xff]
        %v452 = vld [vmem:[%s1 + $0x430] sm:$0xff]
        %v453 = vld [vmem:[%s1 + $0x438] sm:$0xff]
        %v454 = vld [vmem:[%s1 + $0x440] sm:$0xff]
        %v455 = vld [vmem:[%s1 + $0x448] sm:$0xff]
        %v456 = vld [vmem:[%s1 + $0x450] sm:$0xff]
        %v457 = vld [vmem:[%s1 + $0x458] sm:$0xff]
        %v458 = vld [vmem:[%s1 + $0x460] sm:$0xff]
        %v459 = vld [vmem:[%s1 + $0x468] sm:$0xff]
        %v460 = vld [vmem:[%s1 + $0x470] sm:$0xff]
        %v461 = vld [vmem:[%s1 + $0x478] sm:$0xff]
        %v462 = vld [vmem:[%s1 + $0x480] sm:$0xff]
        %v463 = vld [vmem:[%s1 + $0x488] sm:$0xff]
        %v464 = vld [vmem:[%s1 + $0x490] sm:$0xff]
        %v465 = vld [vmem:[%s1 + $0x498] sm:$0xff]
        %v466 = vld [vmem:[%s1 + $0x4a0] sm:$0xff]
        %v467 = vld [vmem:[%s1 + $0x4a8] sm:$0xff]
        %v468 = vld [vmem:[%s1 + $0x4b0] sm:$0xff]
        %v469 = vld [vmem:[%s1 + $0x4b8] sm:$0xff]
        %v470 = vld [vmem:[%s1 + $0x4c0] sm:$0xff]
        %v471 = vld [vmem:[%s1 + $0x4c8] sm:$0xff]
        %v472 = vld [vmem:[%s1 + $0x4d0] sm:$0xff]
        %v473 = vld [vmem:[%s1 + $0x4d8] sm:$0xff]
        %v474 = vld [vmem:[%s1 + $0x4e0] sm:$0xff]
        %v475 = vld [vmem:[%s1 + $0x4e8] sm:$0xff]
        %v476 = vld [vmem:[%s1 + $0x4f0] sm:$0xff]
        %v477 = vld [vmem:[%s1 + $0x4f8] sm:$0xff]
        %479 = vset.pattern.permute.xlu0 0
        %480 = vperm.xlu0 %479, %v318
        %v481 = vpop.permute.xlu0 %480
        %484 = vset.pattern.permute.xlu0 0
        %485 = vperm.xlu0 %484, %v319
        %v486 = vpop.permute.xlu0 %485
        %489 = vset.pattern.permute.xlu0 0
        %490 = vperm.xlu0 %489, %v320
        %v491 = vpop.permute.xlu0 %490
        %494 = vset.pattern.permute.xlu0 0
        %495 = vperm.xlu0 %494, %v321
        %v496 = vpop.permute.xlu0 %495
        %499 = vset.pattern.permute.xlu0 0
        %500 = vperm.xlu0 %499, %v322
        %v501 = vpop.permute.xlu0 %500
        %504 = vset.pattern.permute.xlu0 0
        %505 = vperm.xlu0 %504, %v323
        %v506 = vpop.permute.xlu0 %505
        %509 = vset.pattern.permute.xlu0 0
        %510 = vperm.xlu0 %509, %v324
        %v511 = vpop.permute.xlu0 %510
        %514 = vset.pattern.permute.xlu0 0
        %515 = vperm.xlu0 %514, %v325
        %v516 = vpop.permute.xlu0 %515
        %519 = vset.pattern.permute.xlu0 0
        %520 = vperm.xlu0 %519, %v326
        %v521 = vpop.permute.xlu0 %520
        %524 = vset.pattern.permute.xlu0 0
        %525 = vperm.xlu0 %524, %v327
        %v526 = vpop.permute.xlu0 %525
        %529 = vset.pattern.permute.xlu0 0
        %530 = vperm.xlu0 %529, %v328
        %v531 = vpop.permute.xlu0 %530
        %534 = vset.pattern.permute.xlu0 0
        %535 = vperm.xlu0 %534, %v329
        %v536 = vpop.permute.xlu0 %535
        %539 = vset.pattern.permute.xlu0 0
        %540 = vperm.xlu0 %539, %v330
        %v541 = vpop.permute.xlu0 %540
        %544 = vset.pattern.permute.xlu0 0
        %545 = vperm.xlu0 %544, %v331
        %v546 = vpop.permute.xlu0 %545
        %549 = vset.pattern.permute.xlu0 0
        %550 = vperm.xlu0 %549, %v332
        %v551 = vpop.permute.xlu0 %550
        %554 = vset.pattern.permute.xlu0 0
        %555 = vperm.xlu0 %554, %v333
        %v556 = vpop.permute.xlu0 %555
        %559 = vset.pattern.permute.xlu0 0
        %560 = vperm.xlu0 %559, %v334
        %v561 = vpop.permute.xlu0 %560
        %564 = vset.pattern.permute.xlu0 0
        %565 = vperm.xlu0 %564, %v335
        %v566 = vpop.permute.xlu0 %565
        %569 = vset.pattern.permute.xlu0 0
        %570 = vperm.xlu0 %569, %v336
        %v571 = vpop.permute.xlu0 %570
        %574 = vset.pattern.permute.xlu0 0
        %575 = vperm.xlu0 %574, %v337
        %v576 = vpop.permute.xlu0 %575
        %579 = vset.pattern.permute.xlu0 0
        %580 = vperm.xlu0 %579, %v338
        %v581 = vpop.permute.xlu0 %580
        %584 = vset.pattern.permute.xlu0 0
        %585 = vperm.xlu0 %584, %v339
        %v586 = vpop.permute.xlu0 %585
        %589 = vset.pattern.permute.xlu0 0
        %590 = vperm.xlu0 %589, %v340
        %v591 = vpop.permute.xlu0 %590
        %594 = vset.pattern.permute.xlu0 0
        %595 = vperm.xlu0 %594, %v341
        %v596 = vpop.permute.xlu0 %595
        %599 = vset.pattern.permute.xlu0 0
        %600 = vperm.xlu0 %599, %v342
        %v601 = vpop.permute.xlu0 %600
        %604 = vset.pattern.permute.xlu0 0
        %605 = vperm.xlu0 %604, %v343
        %v606 = vpop.permute.xlu0 %605
        %609 = vset.pattern.permute.xlu0 0
        %610 = vperm.xlu0 %609, %v344
        %v611 = vpop.permute.xlu0 %610
        %614 = vset.pattern.permute.xlu0 0
        %615 = vperm.xlu0 %614, %v345
        %v616 = vpop.permute.xlu0 %615
        %619 = vset.pattern.permute.xlu0 0
        %620 = vperm.xlu0 %619, %v346
        %v621 = vpop.permute.xlu0 %620
        %624 = vset.pattern.permute.xlu0 0
        %625 = vperm.xlu0 %624, %v347
        %v626 = vpop.permute.xlu0 %625
        %629 = vset.pattern.permute.xlu0 0
        %630 = vperm.xlu0 %629, %v348
        %v631 = vpop.permute.xlu0 %630
        %634 = vset.pattern.permute.xlu0 0
        %635 = vperm.xlu0 %634, %v349
        %v636 = vpop.permute.xlu0 %635
        %639 = vset.pattern.permute.xlu0 0
        %640 = vperm.xlu0 %639, %v350
        %v641 = vpop.permute.xlu0 %640
        %644 = vset.pattern.permute.xlu0 0
        %645 = vperm.xlu0 %644, %v351
        %v646 = vpop.permute.xlu0 %645
        %649 = vset.pattern.permute.xlu0 0
        %650 = vperm.xlu0 %649, %v352
        %v651 = vpop.permute.xlu0 %650
        %654 = vset.pattern.permute.xlu0 0
        %655 = vperm.xlu0 %654, %v353
        %v656 = vpop.permute.xlu0 %655
        %659 = vset.pattern.permute.xlu0 0
        %660 = vperm.xlu0 %659, %v354
        %v661 = vpop.permute.xlu0 %660
        %664 = vset.pattern.permute.xlu0 0
        %665 = vperm.xlu0 %664, %v355
        %v666 = vpop.permute.xlu0 %665
        %669 = vset.pattern.permute.xlu0 0
        %670 = vperm.xlu0 %669, %v356
        %v671 = vpop.permute.xlu0 %670
        %674 = vset.pattern.permute.xlu0 0
        %675 = vperm.xlu0 %674, %v357
        %v676 = vpop.permute.xlu0 %675
        %679 = vset.pattern.permute.xlu0 0
        %680 = vperm.xlu0 %679, %v358
        %v681 = vpop.permute.xlu0 %680
        %684 = vset.pattern.permute.xlu0 0
        %685 = vperm.xlu0 %684, %v359
        %v686 = vpop.permute.xlu0 %685
        %689 = vset.pattern.permute.xlu0 0
        %690 = vperm.xlu0 %689, %v360
        %v691 = vpop.permute.xlu0 %690
        %694 = vset.pattern.permute.xlu0 0
        %695 = vperm.xlu0 %694, %v361
        %v696 = vpop.permute.xlu0 %695
        %699 = vset.pattern.permute.xlu0 0
        %700 = vperm.xlu0 %699, %v362
        %v701 = vpop.permute.xlu0 %700
        %704 = vset.pattern.permute.xlu0 0
        %705 = vperm.xlu0 %704, %v363
        %v706 = vpop.permute.xlu0 %705
        %709 = vset.pattern.permute.xlu0 0
        %710 = vperm.xlu0 %709, %v364
        %v711 = vpop.permute.xlu0 %710
        %714 = vset.pattern.permute.xlu0 0
        %715 = vperm.xlu0 %714, %v365
        %v716 = vpop.permute.xlu0 %715
        %719 = vset.pattern.permute.xlu0 0
        %720 = vperm.xlu0 %719, %v366
        %v721 = vpop.permute.xlu0 %720
        %724 = vset.pattern.permute.xlu0 0
        %725 = vperm.xlu0 %724, %v367
        %v726 = vpop.permute.xlu0 %725
        %729 = vset.pattern.permute.xlu0 0
        %730 = vperm.xlu0 %729, %v368
        %v731 = vpop.permute.xlu0 %730
        %734 = vset.pattern.permute.xlu0 0
        %735 = vperm.xlu0 %734, %v369
        %v736 = vpop.permute.xlu0 %735
        %739 = vset.pattern.permute.xlu0 0
        %740 = vperm.xlu0 %739, %v370
        %v741 = vpop.permute.xlu0 %740
        %744 = vset.pattern.permute.xlu0 0
        %745 = vperm.xlu0 %744, %v371
        %v746 = vpop.permute.xlu0 %745
        %749 = vset.pattern.permute.xlu0 0
        %750 = vperm.xlu0 %749, %v372
        %v751 = vpop.permute.xlu0 %750
        %754 = vset.pattern.permute.xlu0 0
        %755 = vperm.xlu0 %754, %v373
        %v756 = vpop.permute.xlu0 %755
        %759 = vset.pattern.permute.xlu0 0
        %760 = vperm.xlu0 %759, %v374
        %v761 = vpop.permute.xlu0 %760
        %764 = vset.pattern.permute.xlu0 0
        %765 = vperm.xlu0 %764, %v375
        %v766 = vpop.permute.xlu0 %765
        %769 = vset.pattern.permute.xlu0 0
        %770 = vperm.xlu0 %769, %v376
        %v771 = vpop.permute.xlu0 %770
        %774 = vset.pattern.permute.xlu0 0
        %775 = vperm.xlu0 %774, %v377
        %v776 = vpop.permute.xlu0 %775
        %779 = vset.pattern.permute.xlu0 0
        %780 = vperm.xlu0 %779, %v378
        %v781 = vpop.permute.xlu0 %780
        %784 = vset.pattern.permute.xlu0 0
        %785 = vperm.xlu0 %784, %v379
        %v786 = vpop.permute.xlu0 %785
        %789 = vset.pattern.permute.xlu0 0
        %790 = vperm.xlu0 %789, %v380
        %v791 = vpop.permute.xlu0 %790
        %794 = vset.pattern.permute.xlu0 0
        %795 = vperm.xlu0 %794, %v381
        %v796 = vpop.permute.xlu0 %795
        %799 = vset.pattern.permute.xlu0 0
        %800 = vperm.xlu0 %799, %v382
        %v801 = vpop.permute.xlu0 %800
        %804 = vset.pattern.permute.xlu0 0
        %805 = vperm.xlu0 %804, %v383
        %v806 = vpop.permute.xlu0 %805
        %809 = vset.pattern.permute.xlu0 0
        %810 = vperm.xlu0 %809, %v384
        %v811 = vpop.permute.xlu0 %810
        %814 = vset.pattern.permute.xlu0 0
        %815 = vperm.xlu0 %814, %v385
        %v816 = vpop.permute.xlu0 %815
        %819 = vset.pattern.permute.xlu0 0
        %820 = vperm.xlu0 %819, %v386
        %v821 = vpop.permute.xlu0 %820
        %824 = vset.pattern.permute.xlu0 0
        %825 = vperm.xlu0 %824, %v387
        %v826 = vpop.permute.xlu0 %825
        %829 = vset.pattern.permute.xlu0 0
        %830 = vperm.xlu0 %829, %v388
        %v831 = vpop.permute.xlu0 %830
        %834 = vset.pattern.permute.xlu0 0
        %835 = vperm.xlu0 %834, %v389
        %v836 = vpop.permute.xlu0 %835
        %839 = vset.pattern.permute.xlu0 0
        %840 = vperm.xlu0 %839, %v390
        %v841 = vpop.permute.xlu0 %840
        %844 = vset.pattern.permute.xlu0 0
        %845 = vperm.xlu0 %844, %v391
        %v846 = vpop.permute.xlu0 %845
        %849 = vset.pattern.permute.xlu0 0
        %850 = vperm.xlu0 %849, %v392
        %v851 = vpop.permute.xlu0 %850
        %854 = vset.pattern.permute.xlu0 0
        %855 = vperm.xlu0 %854, %v393
        %v856 = vpop.permute.xlu0 %855
        %859 = vset.pattern.permute.xlu0 0
        %860 = vperm.xlu0 %859, %v394
        %v861 = vpop.permute.xlu0 %860
        %864 = vset.pattern.permute.xlu0 0
        %865 = vperm.xlu0 %864, %v395
        %v866 = vpop.permute.xlu0 %865
        %869 = vset.pattern.permute.xlu0 0
        %870 = vperm.xlu0 %869, %v396
        %v871 = vpop.permute.xlu0 %870
        %874 = vset.pattern.permute.xlu0 0
        %875 = vperm.xlu0 %874, %v397
        %v876 = vpop.permute.xlu0 %875
        %879 = vset.pattern.permute.xlu0 0
        %880 = vperm.xlu0 %879, %v398
        %v881 = vpop.permute.xlu0 %880
        %884 = vset.pattern.permute.xlu0 0
        %885 = vperm.xlu0 %884, %v399
        %v886 = vpop.permute.xlu0 %885
        %889 = vset.pattern.permute.xlu0 0
        %890 = vperm.xlu0 %889, %v400
        %v891 = vpop.permute.xlu0 %890
        %894 = vset.pattern.permute.xlu0 0
        %895 = vperm.xlu0 %894, %v401
        %v896 = vpop.permute.xlu0 %895
        %899 = vset.pattern.permute.xlu0 0
        %900 = vperm.xlu0 %899, %v402
        %v901 = vpop.permute.xlu0 %900
        %904 = vset.pattern.permute.xlu0 0
        %905 = vperm.xlu0 %904, %v403
        %v906 = vpop.permute.xlu0 %905
        %909 = vset.pattern.permute.xlu0 0
        %910 = vperm.xlu0 %909, %v404
        %v911 = vpop.permute.xlu0 %910
        %914 = vset.pattern.permute.xlu0 0
        %915 = vperm.xlu0 %914, %v405
        %v916 = vpop.permute.xlu0 %915
        %919 = vset.pattern.permute.xlu0 0
        %920 = vperm.xlu0 %919, %v406
        %v921 = vpop.permute.xlu0 %920
        %924 = vset.pattern.permute.xlu0 0
        %925 = vperm.xlu0 %924, %v407
        %v926 = vpop.permute.xlu0 %925
        %929 = vset.pattern.permute.xlu0 0
        %930 = vperm.xlu0 %929, %v408
        %v931 = vpop.permute.xlu0 %930
        %934 = vset.pattern.permute.xlu0 0
        %935 = vperm.xlu0 %934, %v409
        %v936 = vpop.permute.xlu0 %935
        %939 = vset.pattern.permute.xlu0 0
        %940 = vperm.xlu0 %939, %v410
        %v941 = vpop.permute.xlu0 %940
        %944 = vset.pattern.permute.xlu0 0
        %945 = vperm.xlu0 %944, %v411
        %v946 = vpop.permute.xlu0 %945
        %949 = vset.pattern.permute.xlu0 0
        %950 = vperm.xlu0 %949, %v412
        %v951 = vpop.permute.xlu0 %950
        %954 = vset.pattern.permute.xlu0 0
        %955 = vperm.xlu0 %954, %v413
        %v956 = vpop.permute.xlu0 %955
        %959 = vset.pattern.permute.xlu0 0
        %960 = vperm.xlu0 %959, %v414
        %v961 = vpop.permute.xlu0 %960
        %964 = vset.pattern.permute.xlu0 0
        %965 = vperm.xlu0 %964, %v415
        %v966 = vpop.permute.xlu0 %965
        %969 = vset.pattern.permute.xlu0 0
        %970 = vperm.xlu0 %969, %v416
        %v971 = vpop.permute.xlu0 %970
        %974 = vset.pattern.permute.xlu0 0
        %975 = vperm.xlu0 %974, %v417
        %v976 = vpop.permute.xlu0 %975
        %979 = vset.pattern.permute.xlu0 0
        %980 = vperm.xlu0 %979, %v418
        %v981 = vpop.permute.xlu0 %980
        %984 = vset.pattern.permute.xlu0 0
        %985 = vperm.xlu0 %984, %v419
        %v986 = vpop.permute.xlu0 %985
        %989 = vset.pattern.permute.xlu0 0
        %990 = vperm.xlu0 %989, %v420
        %v991 = vpop.permute.xlu0 %990
        %994 = vset.pattern.permute.xlu0 0
        %995 = vperm.xlu0 %994, %v421
        %v996 = vpop.permute.xlu0 %995
        %999 = vset.pattern.permute.xlu0 0
        %1000 = vperm.xlu0 %999, %v422
        %v1001 = vpop.permute.xlu0 %1000
        %1004 = vset.pattern.permute.xlu0 0
        %1005 = vperm.xlu0 %1004, %v423
        %v1006 = vpop.permute.xlu0 %1005
        %1009 = vset.pattern.permute.xlu0 0
        %1010 = vperm.xlu0 %1009, %v424
        %v1011 = vpop.permute.xlu0 %1010
        %1014 = vset.pattern.permute.xlu0 0
        %1015 = vperm.xlu0 %1014, %v425
        %v1016 = vpop.permute.xlu0 %1015
        %1019 = vset.pattern.permute.xlu0 0
        %1020 = vperm.xlu0 %1019, %v426
        %v1021 = vpop.permute.xlu0 %1020
        %1024 = vset.pattern.permute.xlu0 0
        %1025 = vperm.xlu0 %1024, %v427
        %v1026 = vpop.permute.xlu0 %1025
        %1029 = vset.pattern.permute.xlu0 0
        %1030 = vperm.xlu0 %1029, %v428
        %v1031 = vpop.permute.xlu0 %1030
        %1034 = vset.pattern.permute.xlu0 0
        %1035 = vperm.xlu0 %1034, %v429
        %v1036 = vpop.permute.xlu0 %1035
        %1039 = vset.pattern.permute.xlu0 0
        %1040 = vperm.xlu0 %1039, %v430
        %v1041 = vpop.permute.xlu0 %1040
        %1044 = vset.pattern.permute.xlu0 0
        %1045 = vperm.xlu0 %1044, %v431
        %v1046 = vpop.permute.xlu0 %1045
        %1049 = vset.pattern.permute.xlu0 0
        %1050 = vperm.xlu0 %1049, %v432
        %v1051 = vpop.permute.xlu0 %1050
        %1054 = vset.pattern.permute.xlu0 0
        %1055 = vperm.xlu0 %1054, %v433
        %v1056 = vpop.permute.xlu0 %1055
        %1059 = vset.pattern.permute.xlu0 0
        %1060 = vperm.xlu0 %1059, %v434
        %v1061 = vpop.permute.xlu0 %1060
        %1064 = vset.pattern.permute.xlu0 0
        %1065 = vperm.xlu0 %1064, %v435
        %v1066 = vpop.permute.xlu0 %1065
        %1069 = vset.pattern.permute.xlu0 0
        %1070 = vperm.xlu0 %1069, %v436
        %v1071 = vpop.permute.xlu0 %1070
        %1074 = vset.pattern.permute.xlu0 0
        %1075 = vperm.xlu0 %1074, %v437
        %v1076 = vpop.permute.xlu0 %1075
        %1079 = vset.pattern.permute.xlu0 0
        %1080 = vperm.xlu0 %1079, %v438
        %v1081 = vpop.permute.xlu0 %1080
        %1084 = vset.pattern.permute.xlu0 0
        %1085 = vperm.xlu0 %1084, %v439
        %v1086 = vpop.permute.xlu0 %1085
        %1089 = vset.pattern.permute.xlu0 0
        %1090 = vperm.xlu0 %1089, %v440
        %v1091 = vpop.permute.xlu0 %1090
        %1094 = vset.pattern.permute.xlu0 0
        %1095 = vperm.xlu0 %1094, %v441
        %v1096 = vpop.permute.xlu0 %1095
        %1099 = vset.pattern.permute.xlu0 0
        %1100 = vperm.xlu0 %1099, %v442
        %v1101 = vpop.permute.xlu0 %1100
        %1104 = vset.pattern.permute.xlu0 0
        %1105 = vperm.xlu0 %1104, %v443
        %v1106 = vpop.permute.xlu0 %1105
        %1109 = vset.pattern.permute.xlu0 0
        %1110 = vperm.xlu0 %1109, %v444
        %v1111 = vpop.permute.xlu0 %1110
        %1114 = vset.pattern.permute.xlu0 0
        %1115 = vperm.xlu0 %1114, %v445
        %v1116 = vpop.permute.xlu0 %1115
        %1119 = vset.pattern.permute.xlu0 0
        %1120 = vperm.xlu0 %1119, %v446
        %v1121 = vpop.permute.xlu0 %1120
        %1124 = vset.pattern.permute.xlu0 0
        %1125 = vperm.xlu0 %1124, %v447
        %v1126 = vpop.permute.xlu0 %1125
        %1129 = vset.pattern.permute.xlu0 0
        %1130 = vperm.xlu0 %1129, %v448
        %v1131 = vpop.permute.xlu0 %1130
        %1134 = vset.pattern.permute.xlu0 0
        %1135 = vperm.xlu0 %1134, %v449
        %v1136 = vpop.permute.xlu0 %1135
        %1139 = vset.pattern.permute.xlu0 0
        %1140 = vperm.xlu0 %1139, %v450
        %v1141 = vpop.permute.xlu0 %1140
        %1144 = vset.pattern.permute.xlu0 0
        %1145 = vperm.xlu0 %1144, %v451
        %v1146 = vpop.permute.xlu0 %1145
        %1149 = vset.pattern.permute.xlu0 0
        %1150 = vperm.xlu0 %1149, %v452
        %v1151 = vpop.permute.xlu0 %1150
        %1154 = vset.pattern.permute.xlu0 0
        %1155 = vperm.xlu0 %1154, %v453
        %v1156 = vpop.permute.xlu0 %1155
        %1159 = vset.pattern.permute.xlu0 0
        %1160 = vperm.xlu0 %1159, %v454
        %v1161 = vpop.permute.xlu0 %1160
        %1164 = vset.pattern.permute.xlu0 0
        %1165 = vperm.xlu0 %1164, %v455
        %v1166 = vpop.permute.xlu0 %1165
        %1169 = vset.pattern.permute.xlu0 0
        %1170 = vperm.xlu0 %1169, %v456
        %v1171 = vpop.permute.xlu0 %1170
        %1174 = vset.pattern.permute.xlu0 0
        %1175 = vperm.xlu0 %1174, %v457
        %v1176 = vpop.permute.xlu0 %1175
        %1179 = vset.pattern.permute.xlu0 0
        %1180 = vperm.xlu0 %1179, %v458
        %v1181 = vpop.permute.xlu0 %1180
        %1184 = vset.pattern.permute.xlu0 0
        %1185 = vperm.xlu0 %1184, %v459
        %v1186 = vpop.permute.xlu0 %1185
        %1189 = vset.pattern.permute.xlu0 0
        %1190 = vperm.xlu0 %1189, %v460
        %v1191 = vpop.permute.xlu0 %1190
        %1194 = vset.pattern.permute.xlu0 0
        %1195 = vperm.xlu0 %1194, %v461
        %v1196 = vpop.permute.xlu0 %1195
        %1199 = vset.pattern.permute.xlu0 0
        %1200 = vperm.xlu0 %1199, %v462
        %v1201 = vpop.permute.xlu0 %1200
        %1204 = vset.pattern.permute.xlu0 0
        %1205 = vperm.xlu0 %1204, %v463
        %v1206 = vpop.permute.xlu0 %1205
        %1209 = vset.pattern.permute.xlu0 0
        %1210 = vperm.xlu0 %1209, %v464
        %v1211 = vpop.permute.xlu0 %1210
        %1214 = vset.pattern.permute.xlu0 0
        %1215 = vperm.xlu0 %1214, %v465
        %v1216 = vpop.permute.xlu0 %1215
        %1219 = vset.pattern.permute.xlu0 0
        %1220 = vperm.xlu0 %1219, %v466
        %v1221 = vpop.permute.xlu0 %1220
        %1224 = vset.pattern.permute.xlu0 0
        %1225 = vperm.xlu0 %1224, %v467
        %v1226 = vpop.permute.xlu0 %1225
        %1229 = vset.pattern.permute.xlu0 0
        %1230 = vperm.xlu0 %1229, %v468
        %v1231 = vpop.permute.xlu0 %1230
        %1234 = vset.pattern.permute.xlu0 0
        %1235 = vperm.xlu0 %1234, %v469
        %v1236 = vpop.permute.xlu0 %1235
        %1239 = vset.pattern.permute.xlu0 0
        %1240 = vperm.xlu0 %1239, %v470
        %v1241 = vpop.permute.xlu0 %1240
        %1244 = vset.pattern.permute.xlu0 0
        %1245 = vperm.xlu0 %1244, %v471
        %v1246 = vpop.permute.xlu0 %1245
        %1249 = vset.pattern.permute.xlu0 0
        %1250 = vperm.xlu0 %1249, %v472
        %v1251 = vpop.permute.xlu0 %1250
        %1254 = vset.pattern.permute.xlu0 0
        %1255 = vperm.xlu0 %1254, %v473
        %v1256 = vpop.permute.xlu0 %1255
        %1259 = vset.pattern.permute.xlu0 0
        %1260 = vperm.xlu0 %1259, %v474
        %v1261 = vpop.permute.xlu0 %1260
        %1264 = vset.pattern.permute.xlu0 0
        %1265 = vperm.xlu0 %1264, %v475
        %v1266 = vpop.permute.xlu0 %1265
        %1269 = vset.pattern.permute.xlu0 0
        %1270 = vperm.xlu0 %1269, %v476
        %v1271 = vpop.permute.xlu0 %1270
        %1274 = vset.pattern.permute.xlu0 0
        %1275 = vperm.xlu0 %1274, %v477
        %v1276 = vpop.permute.xlu0 %1275
        %v1278 = vmul.f32 %v158, %v481
        %v1279 = vmul.f32 %v159, %v486
        %v1280 = vmul.f32 %v160, %v491
        %v1281 = vmul.f32 %v161, %v496
        %v1282 = vmul.f32 %v162, %v501
        %v1283 = vmul.f32 %v163, %v506
        %v1284 = vmul.f32 %v164, %v511
        %v1285 = vmul.f32 %v165, %v516
        %v1286 = vmul.f32 %v166, %v521
        %v1287 = vmul.f32 %v167, %v526
        %v1288 = vmul.f32 %v168, %v531
        %v1289 = vmul.f32 %v169, %v536
        %v1290 = vmul.f32 %v170, %v541
        %v1291 = vmul.f32 %v171, %v546
        %v1292 = vmul.f32 %v172, %v551
        %v1293 = vmul.f32 %v173, %v556
        %v1294 = vmul.f32 %v174, %v561
        %v1295 = vmul.f32 %v175, %v566
        %v1296 = vmul.f32 %v176, %v571
        %v1297 = vmul.f32 %v177, %v576
        %v1298 = vmul.f32 %v178, %v581
        %v1299 = vmul.f32 %v179, %v586
        %v1300 = vmul.f32 %v180, %v591
        %v1301 = vmul.f32 %v181, %v596
        %v1302 = vmul.f32 %v182, %v601
        %v1303 = vmul.f32 %v183, %v606
        %v1304 = vmul.f32 %v184, %v611
        %v1305 = vmul.f32 %v185, %v616
        %v1306 = vmul.f32 %v186, %v621
        %v1307 = vmul.f32 %v187, %v626
        %v1308 = vmul.f32 %v188, %v631
        %v1309 = vmul.f32 %v189, %v636
        %v1310 = vmul.f32 %v190, %v641
        %v1311 = vmul.f32 %v191, %v646
        %v1312 = vmul.f32 %v192, %v651
        %v1313 = vmul.f32 %v193, %v656
        %v1314 = vmul.f32 %v194, %v661
        %v1315 = vmul.f32 %v195, %v666
        %v1316 = vmul.f32 %v196, %v671
        %v1317 = vmul.f32 %v197, %v676
        %v1318 = vmul.f32 %v198, %v681
        %v1319 = vmul.f32 %v199, %v686
        %v1320 = vmul.f32 %v200, %v691
        %v1321 = vmul.f32 %v201, %v696
        %v1322 = vmul.f32 %v202, %v701
        %v1323 = vmul.f32 %v203, %v706
        %v1324 = vmul.f32 %v204, %v711
        %v1325 = vmul.f32 %v205, %v716
        %v1326 = vmul.f32 %v206, %v721
        %v1327 = vmul.f32 %v207, %v726
        %v1328 = vmul.f32 %v208, %v731
        %v1329 = vmul.f32 %v209, %v736
        %v1330 = vmul.f32 %v210, %v741
        %v1331 = vmul.f32 %v211, %v746
        %v1332 = vmul.f32 %v212, %v751
        %v1333 = vmul.f32 %v213, %v756
        %v1334 = vmul.f32 %v214, %v761
        %v1335 = vmul.f32 %v215, %v766
        %v1336 = vmul.f32 %v216, %v771
        %v1337 = vmul.f32 %v217, %v776
        %v1338 = vmul.f32 %v218, %v781
        %v1339 = vmul.f32 %v219, %v786
        %v1340 = vmul.f32 %v220, %v791
        %v1341 = vmul.f32 %v221, %v796
        %v1342 = vmul.f32 %v222, %v801
        %v1343 = vmul.f32 %v223, %v806
        %v1344 = vmul.f32 %v224, %v811
        %v1345 = vmul.f32 %v225, %v816
        %v1346 = vmul.f32 %v226, %v821
        %v1347 = vmul.f32 %v227, %v826
        %v1348 = vmul.f32 %v228, %v831
        %v1349 = vmul.f32 %v229, %v836
        %v1350 = vmul.f32 %v230, %v841
        %v1351 = vmul.f32 %v231, %v846
        %v1352 = vmul.f32 %v232, %v851
        %v1353 = vmul.f32 %v233, %v856
        %v1354 = vmul.f32 %v234, %v861
        %v1355 = vmul.f32 %v235, %v866
        %v1356 = vmul.f32 %v236, %v871
        %v1357 = vmul.f32 %v237, %v876
        %v1358 = vmul.f32 %v238, %v881
        %v1359 = vmul.f32 %v239, %v886
        %v1360 = vmul.f32 %v240, %v891
        %v1361 = vmul.f32 %v241, %v896
        %v1362 = vmul.f32 %v242, %v901
        %v1363 = vmul.f32 %v243, %v906
        %v1364 = vmul.f32 %v244, %v911
        %v1365 = vmul.f32 %v245, %v916
        %v1366 = vmul.f32 %v246, %v921
        %v1367 = vmul.f32 %v247, %v926
        %v1368 = vmul.f32 %v248, %v931
        %v1369 = vmul.f32 %v249, %v936
        %v1370 = vmul.f32 %v250, %v941
        %v1371 = vmul.f32 %v251, %v946
        %v1372 = vmul.f32 %v252, %v951
        %v1373 = vmul.f32 %v253, %v956
        %v1374 = vmul.f32 %v254, %v961
        %v1375 = vmul.f32 %v255, %v966
        %v1376 = vmul.f32 %v256, %v971
        %v1377 = vmul.f32 %v257, %v976
        %v1378 = vmul.f32 %v258, %v981
        %v1379 = vmul.f32 %v259, %v986
        %v1380 = vmul.f32 %v260, %v991
        %v1381 = vmul.f32 %v261, %v996
        %v1382 = vmul.f32 %v262, %v1001
        %v1383 = vmul.f32 %v263, %v1006
        %v1384 = vmul.f32 %v264, %v1011
        %v1385 = vmul.f32 %v265, %v1016
        %v1386 = vmul.f32 %v266, %v1021
        %v1387 = vmul.f32 %v267, %v1026
        %v1388 = vmul.f32 %v268, %v1031
        %v1389 = vmul.f32 %v269, %v1036
        %v1390 = vmul.f32 %v270, %v1041
        %v1391 = vmul.f32 %v271, %v1046
        %v1392 = vmul.f32 %v272, %v1051
        %v1393 = vmul.f32 %v273, %v1056
        %v1394 = vmul.f32 %v274, %v1061
        %v1395 = vmul.f32 %v275, %v1066
        %v1396 = vmul.f32 %v276, %v1071
        %v1397 = vmul.f32 %v277, %v1076
        %v1398 = vmul.f32 %v278, %v1081
        %v1399 = vmul.f32 %v279, %v1086
        %v1400 = vmul.f32 %v280, %v1091
        %v1401 = vmul.f32 %v281, %v1096
        %v1402 = vmul.f32 %v282, %v1101
        %v1403 = vmul.f32 %v283, %v1106
        %v1404 = vmul.f32 %v284, %v1111
        %v1405 = vmul.f32 %v285, %v1116
        %v1406 = vmul.f32 %v286, %v1121
        %v1407 = vmul.f32 %v287, %v1126
        %v1408 = vmul.f32 %v288, %v1131
        %v1409 = vmul.f32 %v289, %v1136
        %v1410 = vmul.f32 %v290, %v1141
        %v1411 = vmul.f32 %v291, %v1146
        %v1412 = vmul.f32 %v292, %v1151
        %v1413 = vmul.f32 %v293, %v1156
        %v1414 = vmul.f32 %v294, %v1161
        %v1415 = vmul.f32 %v295, %v1166
        %v1416 = vmul.f32 %v296, %v1171
        %v1417 = vmul.f32 %v297, %v1176
        %v1418 = vmul.f32 %v298, %v1181
        %v1419 = vmul.f32 %v299, %v1186
        %v1420 = vmul.f32 %v300, %v1191
        %v1421 = vmul.f32 %v301, %v1196
        %v1422 = vmul.f32 %v302, %v1201
        %v1423 = vmul.f32 %v303, %v1206
        %v1424 = vmul.f32 %v304, %v1211
        %v1425 = vmul.f32 %v305, %v1216
        %v1426 = vmul.f32 %v306, %v1221
        %v1427 = vmul.f32 %v307, %v1226
        %v1428 = vmul.f32 %v308, %v1231
        %v1429 = vmul.f32 %v309, %v1236
        %v1430 = vmul.f32 %v310, %v1241
        %v1431 = vmul.f32 %v311, %v1246
        %v1432 = vmul.f32 %v312, %v1251
        %v1433 = vmul.f32 %v313, %v1256
        %v1434 = vmul.f32 %v314, %v1261
        %v1435 = vmul.f32 %v315, %v1266
        %v1436 = vmul.f32 %v316, %v1271
        %v1437 = vmul.f32 %v317, %v1276
        %vm1438 = vcmask 523264
        %v1439 = vsel %vm1438, %v1278, 0.0
        %v1440 = vsel %vm1438, %v1279, 0.0
        %v1441 = vadd.f32 %v1439, %v1440
        %v1442 = vsel %vm1438, %v1280, 0.0
        %v1443 = vadd.f32 %v1441, %v1442
        %v1444 = vsel %vm1438, %v1281, 0.0
        %v1445 = vadd.f32 %v1443, %v1444
        %v1446 = vsel %vm1438, %v1282, 0.0
        %v1447 = vadd.f32 %v1445, %v1446
        %v1448 = vsel %vm1438, %v1283, 0.0
        %v1449 = vadd.f32 %v1447, %v1448
        %v1450 = vsel %vm1438, %v1284, 0.0
        %v1451 = vadd.f32 %v1449, %v1450
        %v1452 = vsel %vm1438, %v1285, 0.0
        %v1453 = vadd.f32 %v1451, %v1452
        %v1454 = vsel %vm1438, %v1286, 0.0
        %v1455 = vadd.f32 %v1453, %v1454
        %v1456 = vsel %vm1438, %v1287, 0.0
        %v1457 = vadd.f32 %v1455, %v1456
        %v1458 = vsel %vm1438, %v1288, 0.0
        %v1459 = vadd.f32 %v1457, %v1458
        %v1460 = vsel %vm1438, %v1289, 0.0
        %v1461 = vadd.f32 %v1459, %v1460
        %v1462 = vsel %vm1438, %v1290, 0.0
        %v1463 = vadd.f32 %v1461, %v1462
        %v1464 = vsel %vm1438, %v1291, 0.0
        %v1465 = vadd.f32 %v1463, %v1464
        %v1466 = vsel %vm1438, %v1292, 0.0
        %v1467 = vadd.f32 %v1465, %v1466
        %v1468 = vsel %vm1438, %v1293, 0.0
        %v1469 = vadd.f32 %v1467, %v1468
        %v1470 = vsel %vm1438, %v1294, 0.0
        %v1471 = vadd.f32 %v1469, %v1470
        %v1472 = vsel %vm1438, %v1295, 0.0
        %v1473 = vadd.f32 %v1471, %v1472
        %v1474 = vsel %vm1438, %v1296, 0.0
        %v1475 = vadd.f32 %v1473, %v1474
        %v1476 = vsel %vm1438, %v1297, 0.0
        %v1477 = vadd.f32 %v1475, %v1476
        %v1478 = vsel %vm1438, %v1298, 0.0
        %v1479 = vadd.f32 %v1477, %v1478
        %v1480 = vsel %vm1438, %v1299, 0.0
        %v1481 = vadd.f32 %v1479, %v1480
        %v1482 = vsel %vm1438, %v1300, 0.0
        %v1483 = vadd.f32 %v1481, %v1482
        %v1484 = vsel %vm1438, %v1301, 0.0
        %v1485 = vadd.f32 %v1483, %v1484
        %v1486 = vsel %vm1438, %v1302, 0.0
        %v1487 = vadd.f32 %v1485, %v1486
        %v1488 = vsel %vm1438, %v1303, 0.0
        %v1489 = vadd.f32 %v1487, %v1488
        %v1490 = vsel %vm1438, %v1304, 0.0
        %v1491 = vadd.f32 %v1489, %v1490
        %v1492 = vsel %vm1438, %v1305, 0.0
        %v1493 = vadd.f32 %v1491, %v1492
        %v1494 = vsel %vm1438, %v1306, 0.0
        %v1495 = vadd.f32 %v1493, %v1494
        %v1496 = vsel %vm1438, %v1307, 0.0
        %v1497 = vadd.f32 %v1495, %v1496
        %v1498 = vsel %vm1438, %v1308, 0.0
        %v1499 = vadd.f32 %v1497, %v1498
        %v1500 = vsel %vm1438, %v1309, 0.0
        %v1501 = vadd.f32 %v1499, %v1500
        %v1502 = vsel %vm1438, %v1310, 0.0
        %v1503 = vadd.f32 %v1501, %v1502
        %v1504 = vsel %vm1438, %v1311, 0.0
        %v1505 = vadd.f32 %v1503, %v1504
        %v1506 = vsel %vm1438, %v1312, 0.0
        %v1507 = vadd.f32 %v1505, %v1506
        %v1508 = vsel %vm1438, %v1313, 0.0
        %v1509 = vadd.f32 %v1507, %v1508
        %v1510 = vsel %vm1438, %v1314, 0.0
        %v1511 = vadd.f32 %v1509, %v1510
        %v1512 = vsel %vm1438, %v1315, 0.0
        %v1513 = vadd.f32 %v1511, %v1512
        %v1514 = vsel %vm1438, %v1316, 0.0
        %v1515 = vadd.f32 %v1513, %v1514
        %v1516 = vsel %vm1438, %v1317, 0.0
        %v1517 = vadd.f32 %v1515, %v1516
        %v1518 = vsel %vm1438, %v1318, 0.0
        %v1519 = vadd.f32 %v1517, %v1518
        %v1520 = vsel %vm1438, %v1319, 0.0
        %v1521 = vadd.f32 %v1519, %v1520
        %v1522 = vsel %vm1438, %v1320, 0.0
        %v1523 = vadd.f32 %v1521, %v1522
        %v1524 = vsel %vm1438, %v1321, 0.0
        %v1525 = vadd.f32 %v1523, %v1524
        %v1526 = vsel %vm1438, %v1322, 0.0
        %v1527 = vadd.f32 %v1525, %v1526
        %v1528 = vsel %vm1438, %v1323, 0.0
        %v1529 = vadd.f32 %v1527, %v1528
        %v1530 = vsel %vm1438, %v1324, 0.0
        %v1531 = vadd.f32 %v1529, %v1530
        %v1532 = vsel %vm1438, %v1325, 0.0
        %v1533 = vadd.f32 %v1531, %v1532
        %v1534 = vsel %vm1438, %v1326, 0.0
        %v1535 = vadd.f32 %v1533, %v1534
        %v1536 = vsel %vm1438, %v1327, 0.0
        %v1537 = vadd.f32 %v1535, %v1536
        %v1538 = vsel %vm1438, %v1328, 0.0
        %v1539 = vadd.f32 %v1537, %v1538
        %v1540 = vsel %vm1438, %v1329, 0.0
        %v1541 = vadd.f32 %v1539, %v1540
        %v1542 = vsel %vm1438, %v1330, 0.0
        %v1543 = vadd.f32 %v1541, %v1542
        %v1544 = vsel %vm1438, %v1331, 0.0
        %v1545 = vadd.f32 %v1543, %v1544
        %v1546 = vsel %vm1438, %v1332, 0.0
        %v1547 = vadd.f32 %v1545, %v1546
        %v1548 = vsel %vm1438, %v1333, 0.0
        %v1549 = vadd.f32 %v1547, %v1548
        %v1550 = vsel %vm1438, %v1334, 0.0
        %v1551 = vadd.f32 %v1549, %v1550
        %v1552 = vsel %vm1438, %v1335, 0.0
        %v1553 = vadd.f32 %v1551, %v1552
        %v1554 = vsel %vm1438, %v1336, 0.0
        %v1555 = vadd.f32 %v1553, %v1554
        %v1556 = vsel %vm1438, %v1337, 0.0
        %v1557 = vadd.f32 %v1555, %v1556
        %v1558 = vsel %vm1438, %v1338, 0.0
        %v1559 = vadd.f32 %v1557, %v1558
        %v1560 = vsel %vm1438, %v1339, 0.0
        %v1561 = vadd.f32 %v1559, %v1560
        %v1562 = vsel %vm1438, %v1340, 0.0
        %v1563 = vadd.f32 %v1561, %v1562
        %v1564 = vsel %vm1438, %v1341, 0.0
        %v1565 = vadd.f32 %v1563, %v1564
        %v1566 = vsel %vm1438, %v1342, 0.0
        %v1567 = vadd.f32 %v1565, %v1566
        %v1568 = vsel %vm1438, %v1343, 0.0
        %v1569 = vadd.f32 %v1567, %v1568
        %v1570 = vsel %vm1438, %v1344, 0.0
        %v1571 = vadd.f32 %v1569, %v1570
        %v1572 = vsel %vm1438, %v1345, 0.0
        %v1573 = vadd.f32 %v1571, %v1572
        %v1574 = vsel %vm1438, %v1346, 0.0
        %v1575 = vadd.f32 %v1573, %v1574
        %v1576 = vsel %vm1438, %v1347, 0.0
        %v1577 = vadd.f32 %v1575, %v1576
        %v1578 = vsel %vm1438, %v1348, 0.0
        %v1579 = vadd.f32 %v1577, %v1578
        %v1580 = vsel %vm1438, %v1349, 0.0
        %v1581 = vadd.f32 %v1579, %v1580
        %v1582 = vsel %vm1438, %v1350, 0.0
        %v1583 = vadd.f32 %v1581, %v1582
        %v1584 = vsel %vm1438, %v1351, 0.0
        %v1585 = vadd.f32 %v1583, %v1584
        %v1586 = vsel %vm1438, %v1352, 0.0
        %v1587 = vadd.f32 %v1585, %v1586
        %v1588 = vsel %vm1438, %v1353, 0.0
        %v1589 = vadd.f32 %v1587, %v1588
        %v1590 = vsel %vm1438, %v1354, 0.0
        %v1591 = vadd.f32 %v1589, %v1590
        %v1592 = vsel %vm1438, %v1355, 0.0
        %v1593 = vadd.f32 %v1591, %v1592
        %v1594 = vsel %vm1438, %v1356, 0.0
        %v1595 = vadd.f32 %v1593, %v1594
        %v1596 = vsel %vm1438, %v1357, 0.0
        %v1597 = vadd.f32 %v1595, %v1596
        %v1598 = vsel %vm1438, %v1358, 0.0
        %v1599 = vadd.f32 %v1597, %v1598
        %v1600 = vsel %vm1438, %v1359, 0.0
        %v1601 = vadd.f32 %v1599, %v1600
        %v1602 = vsel %vm1438, %v1360, 0.0
        %v1603 = vadd.f32 %v1601, %v1602
        %v1604 = vsel %vm1438, %v1361, 0.0
        %v1605 = vadd.f32 %v1603, %v1604
        %v1606 = vsel %vm1438, %v1362, 0.0
        %v1607 = vadd.f32 %v1605, %v1606
        %v1608 = vsel %vm1438, %v1363, 0.0
        %v1609 = vadd.f32 %v1607, %v1608
        %v1610 = vsel %vm1438, %v1364, 0.0
        %v1611 = vadd.f32 %v1609, %v1610
        %v1612 = vsel %vm1438, %v1365, 0.0
        %v1613 = vadd.f32 %v1611, %v1612
        %v1614 = vsel %vm1438, %v1366, 0.0
        %v1615 = vadd.f32 %v1613, %v1614
        %v1616 = vsel %vm1438, %v1367, 0.0
        %v1617 = vadd.f32 %v1615, %v1616
        %v1618 = vsel %vm1438, %v1368, 0.0
        %v1619 = vadd.f32 %v1617, %v1618
        %v1620 = vsel %vm1438, %v1369, 0.0
        %v1621 = vadd.f32 %v1619, %v1620
        %v1622 = vsel %vm1438, %v1370, 0.0
        %v1623 = vadd.f32 %v1621, %v1622
        %v1624 = vsel %vm1438, %v1371, 0.0
        %v1625 = vadd.f32 %v1623, %v1624
        %v1626 = vsel %vm1438, %v1372, 0.0
        %v1627 = vadd.f32 %v1625, %v1626
        %v1628 = vsel %vm1438, %v1373, 0.0
        %v1629 = vadd.f32 %v1627, %v1628
        %v1630 = vsel %vm1438, %v1374, 0.0
        %v1631 = vadd.f32 %v1629, %v1630
        %v1632 = vsel %vm1438, %v1375, 0.0
        %v1633 = vadd.f32 %v1631, %v1632
        %v1634 = vsel %vm1438, %v1376, 0.0
        %v1635 = vadd.f32 %v1633, %v1634
        %v1636 = vsel %vm1438, %v1377, 0.0
        %v1637 = vadd.f32 %v1635, %v1636
        %v1638 = vsel %vm1438, %v1378, 0.0
        %v1639 = vadd.f32 %v1637, %v1638
        %v1640 = vsel %vm1438, %v1379, 0.0
        %v1641 = vadd.f32 %v1639, %v1640
        %v1642 = vsel %vm1438, %v1380, 0.0
        %v1643 = vadd.f32 %v1641, %v1642
        %v1644 = vsel %vm1438, %v1381, 0.0
        %v1645 = vadd.f32 %v1643, %v1644
        %v1646 = vsel %vm1438, %v1382, 0.0
        %v1647 = vadd.f32 %v1645, %v1646
        %v1648 = vsel %vm1438, %v1383, 0.0
        %v1649 = vadd.f32 %v1647, %v1648
        %v1650 = vsel %vm1438, %v1384, 0.0
        %v1651 = vadd.f32 %v1649, %v1650
        %v1652 = vsel %vm1438, %v1385, 0.0
        %v1653 = vadd.f32 %v1651, %v1652
        %v1654 = vsel %vm1438, %v1386, 0.0
        %v1655 = vadd.f32 %v1653, %v1654
        %v1656 = vsel %vm1438, %v1387, 0.0
        %v1657 = vadd.f32 %v1655, %v1656
        %v1658 = vsel %vm1438, %v1388, 0.0
        %v1659 = vadd.f32 %v1657, %v1658
        %v1660 = vsel %vm1438, %v1389, 0.0
        %v1661 = vadd.f32 %v1659, %v1660
        %v1662 = vsel %vm1438, %v1390, 0.0
        %v1663 = vadd.f32 %v1661, %v1662
        %v1664 = vsel %vm1438, %v1391, 0.0
        %v1665 = vadd.f32 %v1663, %v1664
        %v1666 = vsel %vm1438, %v1392, 0.0
        %v1667 = vadd.f32 %v1665, %v1666
        %v1668 = vsel %vm1438, %v1393, 0.0
        %v1669 = vadd.f32 %v1667, %v1668
        %v1670 = vsel %vm1438, %v1394, 0.0
        %v1671 = vadd.f32 %v1669, %v1670
        %v1672 = vsel %vm1438, %v1395, 0.0
        %v1673 = vadd.f32 %v1671, %v1672
        %v1674 = vsel %vm1438, %v1396, 0.0
        %v1675 = vadd.f32 %v1673, %v1674
        %v1676 = vsel %vm1438, %v1397, 0.0
        %v1677 = vadd.f32 %v1675, %v1676
        %v1678 = vsel %vm1438, %v1398, 0.0
        %v1679 = vadd.f32 %v1677, %v1678
        %v1680 = vsel %vm1438, %v1399, 0.0
        %v1681 = vadd.f32 %v1679, %v1680
        %v1682 = vsel %vm1438, %v1400, 0.0
        %v1683 = vadd.f32 %v1681, %v1682
        %v1684 = vsel %vm1438, %v1401, 0.0
        %v1685 = vadd.f32 %v1683, %v1684
        %v1686 = vsel %vm1438, %v1402, 0.0
        %v1687 = vadd.f32 %v1685, %v1686
        %v1688 = vsel %vm1438, %v1403, 0.0
        %v1689 = vadd.f32 %v1687, %v1688
        %v1690 = vsel %vm1438, %v1404, 0.0
        %v1691 = vadd.f32 %v1689, %v1690
        %v1692 = vsel %vm1438, %v1405, 0.0
        %v1693 = vadd.f32 %v1691, %v1692
        %v1694 = vsel %vm1438, %v1406, 0.0
        %v1695 = vadd.f32 %v1693, %v1694
        %v1696 = vsel %vm1438, %v1407, 0.0
        %v1697 = vadd.f32 %v1695, %v1696
        %v1698 = vsel %vm1438, %v1408, 0.0
        %v1699 = vadd.f32 %v1697, %v1698
        %v1700 = vsel %vm1438, %v1409, 0.0
        %v1701 = vadd.f32 %v1699, %v1700
        %v1702 = vsel %vm1438, %v1410, 0.0
        %v1703 = vadd.f32 %v1701, %v1702
        %v1704 = vsel %vm1438, %v1411, 0.0
        %v1705 = vadd.f32 %v1703, %v1704
        %v1706 = vsel %vm1438, %v1412, 0.0
        %v1707 = vadd.f32 %v1705, %v1706
        %v1708 = vsel %vm1438, %v1413, 0.0
        %v1709 = vadd.f32 %v1707, %v1708
        %v1710 = vsel %vm1438, %v1414, 0.0
        %v1711 = vadd.f32 %v1709, %v1710
        %v1712 = vsel %vm1438, %v1415, 0.0
        %v1713 = vadd.f32 %v1711, %v1712
        %v1714 = vsel %vm1438, %v1416, 0.0
        %v1715 = vadd.f32 %v1713, %v1714
        %v1716 = vsel %vm1438, %v1417, 0.0
        %v1717 = vadd.f32 %v1715, %v1716
        %v1718 = vsel %vm1438, %v1418, 0.0
        %v1719 = vadd.f32 %v1717, %v1718
        %v1720 = vsel %vm1438, %v1419, 0.0
        %v1721 = vadd.f32 %v1719, %v1720
        %v1722 = vsel %vm1438, %v1420, 0.0
        %v1723 = vadd.f32 %v1721, %v1722
        %v1724 = vsel %vm1438, %v1421, 0.0
        %v1725 = vadd.f32 %v1723, %v1724
        %v1726 = vsel %vm1438, %v1422, 0.0
        %v1727 = vadd.f32 %v1725, %v1726
        %v1728 = vsel %vm1438, %v1423, 0.0
        %v1729 = vadd.f32 %v1727, %v1728
        %v1730 = vsel %vm1438, %v1424, 0.0
        %v1731 = vadd.f32 %v1729, %v1730
        %v1732 = vsel %vm1438, %v1425, 0.0
        %v1733 = vadd.f32 %v1731, %v1732
        %v1734 = vsel %vm1438, %v1426, 0.0
        %v1735 = vadd.f32 %v1733, %v1734
        %v1736 = vsel %vm1438, %v1427, 0.0
        %v1737 = vadd.f32 %v1735, %v1736
        %v1738 = vsel %vm1438, %v1428, 0.0
        %v1739 = vadd.f32 %v1737, %v1738
        %v1740 = vsel %vm1438, %v1429, 0.0
        %v1741 = vadd.f32 %v1739, %v1740
        %v1742 = vsel %vm1438, %v1430, 0.0
        %v1743 = vadd.f32 %v1741, %v1742
        %v1744 = vsel %vm1438, %v1431, 0.0
        %v1745 = vadd.f32 %v1743, %v1744
        %v1746 = vsel %vm1438, %v1432, 0.0
        %v1747 = vadd.f32 %v1745, %v1746
        %v1748 = vsel %vm1438, %v1433, 0.0
        %v1749 = vadd.f32 %v1747, %v1748
        %v1750 = vsel %vm1438, %v1434, 0.0
        %v1751 = vadd.f32 %v1749, %v1750
        %v1752 = vsel %vm1438, %v1435, 0.0
        %v1753 = vadd.f32 %v1751, %v1752
        %v1754 = vsel %vm1438, %v1436, 0.0
        %v1755 = vadd.f32 %v1753, %v1754
        %v1756 = vsel %vm1438, %v1437, 0.0
        %v1757 = vadd.f32 %v1755, %v1756
        %1758 = vadd.xlane.f32.xlu0 %v1757
        %v1759 = vpop.xlane.xlu0 %1758
        %v1760 = vrot.slane %v1759, 4
        %v1761 = vadd.f32 %v1759, %v1760
        %v1762 = vrot.slane %v1761, 2
        %v1763 = vadd.f32 %v1761, %v1762
        %v1764 = vrot.slane %v1763, 1
        %v1765 = vadd.f32 %v1763, %v1764
        %s1766 = vtos %v1765
        %s1767 = smul.f32 %s1766, 0.015625
        %s1768 = sld [smem:[#allocation2]]
        %s1769 = sadd.f32 %s1767, %s1768
        %s1770 = smul.u32 %s16, 128
        %s1771 = scalar_lea.smem [#allocation3], %s1770
        %1772 = sst [smem:[%s1771]] %s1769
        // Predicated region
        $region33: #{tpu_custom_call.1} parent=31 // pred_check
          %p1773 = pneg %p97
        $region34: #{tpu_custom_call.1} parent=31 // pred_check_branch
          %1775 = sbr.rel (%p1773) target = $region36
        $region35: #{tpu_custom_call.1} parent=31 // pred_region
          %s1777 = ssub.s32 32, 32
          %1778 = vsyncadd [#allocation4], %s1777
          %s1780 = sshll.u32 %s3, 4
          %s1781 = int_to_ptr.vmem [resolvable:$true] %s1780
          %1783 = dma.smem_to_vmem [#allocation3], 32, %s1781, [#allocation4]
        $region36: #{tpu_custom_call.1} parent=31 // pred_fallthru
          _
        // Predicated region
        $region37: #{tpu_custom_call.1} parent=31 // pred_check
          %p1784 = pneg %p97
        $region38: #{tpu_custom_call.1} parent=31 // pred_check_branch
          %1786 = sbr.rel (%p1784) target = $region40
        $region39: #{tpu_custom_call.1} parent=31 // pred_region
          %1787 = dma.done [#allocation4], 32
        $region40: #{tpu_custom_call.1} parent=31 // pred_fallthru
          _
        %1788 = sfence
      $region32: #{tpu_custom_call.1} parent=5 // pred_fallthru
        _
      %p1789 = scmp.le.s32.totalorder 2, %s11
      // Predicated region
      $region41: #{tpu_custom_call.1} parent=5 // pred_check
        %p1790 = pneg %p1789
      $region42: #{tpu_custom_call.1} parent=5 // pred_check_branch
        %1792 = sbr.rel (%p1790) target = $region44
      $region43: #{tpu_custom_call.1} parent=5 // pred_region
        %s1793 = ssub.s32 %s11, 2
      $region44: #{tpu_custom_call.1} parent=5 // pred_fallthru
        _
    $region6: #{tpu_custom_call.1} parent=1 // loop_footer
      %s15 = sadd.s32 1, %s11
    $region7: #{tpu_custom_call.1} parent=1 // loop_footer_branch
      %10 = sbr.rel target = $region3
    $region8: #{tpu_custom_call.1} parent=1 // loop_exit
      _
    %1794 = vsyncpa [#allocation4], 1
    %s1795 = scalar_lea.sflag [#allocation4], 1
    %1796 = vsyncpa %s1795, 1

</llo_original>
